<compile_context>
chip_gen: v7x
topology: tpu7x:2x2x1
jax: 0.10.0
libtpu: 0.0.40
codegen_flags: <defaults>
</compile_context>

<pallas_src>
import functools
import math

import jax
import jax.numpy as jnp
from jax.experimental import pallas as pl
from jax.experimental.pallas import tpu as pltpu


LANE = 128        # feature dims padded to the 128-lane vreg width
MAX_TILE = 2048   # v7x VMEM ceiling: 2 x 2048^2 bf16 A tiles = 16 MiB
MIN_TILE = 256


def _round_up(x, m):
    return ((x + m - 1) // m) * m


def _choose_tile(n):
    """Largest square A tile in [256, 2048] that still yields >= 2 row tiles
    (feeds both v7x TensorCores on the 'parallel' axis); tiny graphs fall back
    to a single 256 tile."""
    for t in (MAX_TILE, 1024, 512):
        if _round_up(n, t) // t >= 2:
            return t
    return MIN_TILE


# ----------------------------- Pallas kernels -------------------------------
def _accumulate(a_ref, m_ref, acc_ref, *, tile_k):
    """acc += A_tile @ M[k-chunk]; M is VMEM-resident, sliced in-kernel."""
    k = pl.program_id(1)

    @pl.when(k == 0)
    def _():
        acc_ref[...] = jnp.zeros_like(acc_ref)

    row0 = pl.multiple_of(k * tile_k, tile_k)
    acc_ref[...] += jnp.dot(a_ref[...], m_ref[pl.ds(row0, tile_k), :],
                            preferred_element_type=jnp.float32)


def _propagate_fused_kernel(a_ref, m_ref, b1_ref, w2_ref, o_ref, acc_ref, *, tile_k):
    """Grid step of  O = relu(A @ M + b1) @ W2  (layer-2 linear fused into the
    layer-1 propagation epilogue; the small [tile,128]@[128,128] matmul rides
    on MXU slack of this memory-bound kernel)."""
    _accumulate(a_ref, m_ref, acc_ref, tile_k=tile_k)

    @pl.when(pl.program_id(1) == pl.num_programs(1) - 1)
    def _():
        h = jnp.maximum(acc_ref[...] + b1_ref[...], 0.0)
        o_ref[...] = jnp.dot(h.astype(w2_ref.dtype), w2_ref[...],
                             preferred_element_type=jnp.float32).astype(o_ref.dtype)


def _propagate_kernel(a_ref, m_ref, b_ref, o_ref, acc_ref, *, tile_k):
    """Grid step of  O = A @ M + b  (final GCN layer, no activation)."""
    _accumulate(a_ref, m_ref, acc_ref, tile_k=tile_k)

    @pl.when(pl.program_id(1) == pl.num_programs(1) - 1)
    def _():
        o_ref[...] = (acc_ref[...] + b_ref[...]).astype(o_ref.dtype)


def _propagate(a_bf16, m_bf16, bias_f32, w2_bf16=None, *, tile, out_dtype):
    """Tiled, pipelined  A @ M (+ bias [, relu, @ W2])  pallas_call.

    a_bf16:   [Np, Np]  bf16  padded normalized adjacency (streamed by tile)
    m_bf16:   [Np, Fp]  bf16  padded features (fully VMEM-resident)
    bias_f32: [1,  Fp]  f32   (VMEM-resident)
    w2_bf16:  [Fp, Op]  bf16  optional fused second linear (VMEM-resident)
    """
    n_pad = a_bf16.shape[0]
    f_pad = m_bf16.shape[1]
    o_pad = w2_bf16.shape[1] if w2_bf16 is not None else f_pad
    grid = (n_pad // tile, n_pad // tile)

    in_specs = [
        pl.BlockSpec((tile, tile), lambda i, k: (i, k)),      # A tile (streamed)
        pl.BlockSpec((n_pad, f_pad), lambda i, k: (0, 0)),    # M: DMA'd once, resident
        pl.BlockSpec((1, f_pad), lambda i, k: (0, 0)),        # bias: resident
    ]
    operands = [a_bf16, m_bf16, bias_f32]
    if w2_bf16 is not None:
        in_specs.append(pl.BlockSpec(w2_bf16.shape, lambda i, k: (0, 0)))  # resident
        operands.append(w2_bf16)
        kernel = functools.partial(_propagate_fused_kernel, tile_k=tile)
        flops = 2 * n_pad * n_pad * f_pad + 2 * n_pad * f_pad * o_pad
        w2_bytes = w2_bf16.size * 2
    else:
        kernel = functools.partial(_propagate_kernel, tile_k=tile)
        flops = 2 * n_pad * n_pad * f_pad
        w2_bytes = 0

    # Resident-M traffic model: A and M each read exactly once.
    cost = pl.CostEstimate(
        flops=flops,
        transcendentals=0,
        bytes_accessed=(a_bf16.size * 2 + m_bf16.size * 2 + bias_f32.size * 4
                        + w2_bytes + n_pad * o_pad * jnp.dtype(out_dtype).itemsize),
    )

    return pl.pallas_call(
        kernel,
        out_shape=jax.ShapeDtypeStruct((n_pad, o_pad), out_dtype),
        grid_spec=pltpu.PrefetchScalarGridSpec(
            num_scalar_prefetch=0,
            grid=grid,
            in_specs=in_specs,
            out_specs=pl.BlockSpec((tile, o_pad), lambda i, k: (i, 0)),
            scratch_shapes=[pltpu.VMEM((tile, f_pad), jnp.float32)],
        ),
        compiler_params=pltpu.CompilerParams(
            dimension_semantics=("parallel", "arbitrary"),
            # <= 56 MiB: headroom under v7x's 64 MiB/TC; plenty on v5e/v6e.
            vmem_limit_bytes=56 * 1024 * 1024,
        ),
        cost_estimate=cost,
    )(*operands)


# ------------------------------ GCN forward ---------------------------------
def gcn_forward(a_pad_bf16, x, w1, b1, w2, b2, *, num_nodes, tile):
    """y = A_hat @ relu(A_hat @ (x W1) + b1) @ W2 + b2  (two GCNConv layers).

    a_pad_bf16 is the pre-padded, pre-cast normalized adjacency from
    prepare_adjacency() — built once, reused for both passes and across calls.
    """
    n = num_nodes
    n_pad = a_pad_bf16.shape[0]
    hidden = w1.shape[1]
    out_dim = w2.shape[1]
    h_pad = _round_up(hidden, LANE)
    o_pad = _round_up(out_dim, LANE)

    # Layer-1 linear (K = input_dim, tiny) hoisted out of the propagation loop.
    xw1 = jnp.dot(x, w1, preferred_element_type=jnp.float32)              # [n, H]
    xw1_p = jnp.zeros((n_pad, h_pad), jnp.bfloat16).at[:n, :hidden].set(
        xw1.astype(jnp.bfloat16))
    b1_p = jnp.zeros((1, h_pad), jnp.float32).at[:, :hidden].set(b1.reshape(1, -1))
    w2_p = jnp.zeros((h_pad, o_pad), jnp.bfloat16).at[:hidden, :out_dim].set(
        w2.astype(jnp.bfloat16))
    b2_p = jnp.zeros((1, o_pad), jnp.float32).at[:, :out_dim].set(b2.reshape(1, -1))

    # Pass 1 (fused epilogue): HW2 = relu(A @ (X W1) + b1) @ W2   -> bf16 [Np, Op]
    hw2 = _propagate(a_pad_bf16, xw1_p, b1_p, w2_p,
                     tile=tile, out_dtype=jnp.bfloat16)

    # Pass 2: Y = A @ HW2 + b2                                    -> f32  [Np, Op]
    y = _propagate(a_pad_bf16, hw2, b2_p, tile=tile, out_dtype=jnp.float32)

    return y[:n, :out_dim]


# ------------------------- plain-JAX glue (setup) ----------------------------
def gcn_norm_dense(edge_index, num_nodes, edge_weight=None):
    """Dense equivalent of PyG's gcn_norm with add_self_loops=True."""
    src = edge_index[0]
    dst = edge_index[1]
    if edge_weight is None:
        edge_weight = jnp.ones((src.shape[0],), jnp.float32)
    # A[dst, src] accumulates messages flowing src -> dst (source_to_target).
    a = jnp.zeros((num_nodes, num_nodes), jnp.float32).at[dst, src].add(edge_weight)
    a = a + jnp.eye(num_nodes, dtype=jnp.float32)          # self loops (weight 1)
    deg = a.sum(axis=1)
    dinv_sqrt = jnp.where(deg > 0.0, 1.0 / jnp.sqrt(deg), 0.0)
    return dinv_sqrt[:, None] * a * dinv_sqrt[None, :]


def prepare_adjacency(edge_index, num_nodes, edge_weight=None):
    """Build + pad + bf16-cast A_hat ONCE (outside the per-forward hot path).

    The per-call f32 pad + cast of the previous version cost ~3 extra full HBM
    passes over Np^2 data per forward; hoisting it here removes that entirely.
    """
    tile = _choose_tile(num_nodes)
    n_pad = _round_up(max(num_nodes, tile), tile)
    a_hat = gcn_norm_dense(edge_index, num_nodes, edge_weight)
    a_pad = jnp.zeros((n_pad, n_pad), jnp.bfloat16).at[:num_nodes, :num_nodes].set(
        a_hat.astype(jnp.bfloat16))
    return a_pad, a_hat, tile


def glorot(key, fan_in, fan_out):
    limit = math.sqrt(6.0 / (fan_in + fan_out))
    return jax.random.uniform(key, (fan_in, fan_out), jnp.float32, -limit, limit)


if __name__ == "__main__":
    # Small synthetic graph: ring of 8 nodes (edges stored in both directions).
    num_nodes = 8
    input_dim = 4
    hidden_dim = 16
    output_dim = 1

    nxt = [(i, (i + 1) % num_nodes) for i in range(num_nodes)]
    edges = nxt + [(j, i) for (i, j) in nxt]
    edge_index = jnp.array(edges, dtype=jnp.int32).T       # [2, E], E = 16

    key = jax.random.PRNGKey(0)
    k_x, k_w1, k_w2 = jax.random.split(key, 3)

    x = jax.random.normal(k_x, (num_nodes, input_dim), jnp.float32)

    # Deterministic parameter init (GCNConv default: glorot weight, zero bias).
    w1 = glorot(k_w1, input_dim, hidden_dim)
    b1 = jnp.zeros((1, hidden_dim), jnp.float32)
    w2 = glorot(k_w2, hidden_dim, output_dim)
    b2 = jnp.zeros((1, output_dim), jnp.float32)

    # Padded bf16 A_hat built once; reused for both propagate passes.
    a_pad, a_hat_f32, tile = prepare_adjacency(edge_index, num_nodes)

    forward = jax.jit(functools.partial(gcn_forward, num_nodes=num_nodes, tile=tile))
    out = forward(a_pad, x, w1, b1, w2, b2)
    out = jax.block_until_ready(out)

    # Reference check in plain f32 JAX (kernel uses bf16 MXU inputs, so allow
    # bf16-level tolerance).
    h_ref = jnp.maximum(a_hat_f32 @ (x @ w1) + b1, 0.0)
    y_ref = a_hat_f32 @ (h_ref @ w2) + b2
    assert out.shape == (num_nodes, output_dim)
    assert jnp.allclose(out, y_ref, atol=5e-2, rtol=5e-2), (
        f"max abs err = {jnp.max(jnp.abs(out - y_ref))}")

    print("KERNEL_OK")
</pallas_src>

<mosaic_0001>
module attributes {stable_mosaic.version = 11 : i64} {
  func.func @_propagate_kernel(%arg0: i32, %arg1: i32, %arg2: memref<256x256xbf16, #tpu.memory_space<vmem>>, %arg3: memref<256x128xbf16, #tpu.memory_space<vmem>>, %arg4: memref<1x128xf32, #tpu.memory_space<vmem>>, %arg5: memref<256x128xf32, #tpu.memory_space<vmem>>, %arg6: memref<256x128xf32, #tpu.memory_space<vmem>>) attributes {dimension_semantics = [#tpu.dimension_semantics<parallel>, #tpu.dimension_semantics<arbitrary>], iteration_bounds = array<i64: 1, 1>, scalar_prefetch = 0 : i64, scratch_operands = 1 : i64, tpu.core_type = #tpu.core_type<tc>, window_params = [{transform_indices = @transform_0, window_bounds = array<i64: 256, 256>}, {pipeline_mode = #tpu.pipeline_mode<synchronous>, transform_indices = @transform_1, window_bounds = array<i64: 256, 128>}, {pipeline_mode = #tpu.pipeline_mode<synchronous>, transform_indices = @transform_2, window_bounds = array<i64: 1, 128>}, {transform_indices = @transform_3, window_bounds = array<i64: 256, 128>}]} {
    %c0_i32 = arith.constant 0 : i32
    %0 = arith.cmpi eq, %arg1, %c0_i32 : i32
    %1 = arith.extui %0 : i1 to i32
    %c0_i32_0 = arith.constant 0 : i32
    %2 = arith.cmpi ne, %1, %c0_i32_0 : i32
    scf.if %2 {
      %cst_9 = arith.constant 0.000000e+00 : f32
      %15 = vector.broadcast %cst_9 : f32 to vector<256x128xf32>
      %c0_10 = arith.constant 0 : index
      %c0_11 = arith.constant 0 : index
      %16 = vector.load %arg6[%c0_10, %c0_11] : memref<256x128xf32, #tpu.memory_space<vmem>>, vector<256x128xf32>
      tpu.vector_store %arg6[%c0_10, %c0_11], %15 {strides = array<i32>} : memref<256x128xf32, #tpu.memory_space<vmem>>, vector<256x128xf32>,
    } else {
    }
    %c256_i32 = arith.constant 256 : i32
    %3 = arith.muli %arg1, %c256_i32 : i32
    %4 = tpu.assume_multiple %3, 256 : i32
    %c0 = arith.constant 0 : index
    %c0_1 = arith.constant 0 : index
    %5 = vector.load %arg6[%c0, %c0_1] : memref<256x128xf32, #tpu.memory_space<vmem>>, vector<256x128xf32>
    %c0_2 = arith.constant 0 : index
    %c0_3 = arith.constant 0 : index
    %6 = vector.load %arg2[%c0_2, %c0_3] : memref<256x256xbf16, #tpu.memory_space<vmem>>, vector<256x256xbf16>
    %7 = arith.index_cast %4 : i32 to index
    %c0_4 = arith.constant 0 : index
    %8 = vector.load %arg3[%7, %c0_4] : memref<256x128xbf16, #tpu.memory_space<vmem>>, vector<256x128xbf16>
    %cst = arith.constant dense<0.000000e+00> : vector<256x128xf32>
    %9 = tpu.matmul %6, %8, %cst {dimension_numbers = #tpu.dot_dimension_numbers<[1], [0], [0], [1], [0, 0, 1, 1], [], []>} : vector<256x256xbf16>, vector<256x128xbf16>, vector<256x128xf32> -> vector<256x128xf32>
    %10 = arith.addf %5, %9 : vector<256x128xf32>
    %c0_5 = arith.constant 0 : index
    %c0_6 = arith.constant 0 : index
    %11 = vector.load %arg6[%c0_5, %c0_6] : memref<256x128xf32, #tpu.memory_space<vmem>>, vector<256x128xf32>
    tpu.vector_store %arg6[%c0_5, %c0_6], %10 {strides = array<i32>} : memref<256x128xf32, #tpu.memory_space<vmem>>, vector<256x128xf32>,
    %c0_i32_7 = arith.constant 0 : i32
    %12 = arith.cmpi eq, %arg1, %c0_i32_7 : i32
    %13 = arith.extui %12 : i1 to i32
    %c0_i32_8 = arith.constant 0 : i32
    %14 = arith.cmpi ne, %13, %c0_i32_8 : i32
    scf.if %14 {
      %c0_9 = arith.constant 0 : index
      %c0_10 = arith.constant 0 : index
      %15 = vector.load %arg6[%c0_9, %c0_10] : memref<256x128xf32, #tpu.memory_space<vmem>>, vector<256x128xf32>
      %c0_11 = arith.constant 0 : index
      %c0_12 = arith.constant 0 : index
      %16 = vector.load %arg4[%c0_11, %c0_12] : memref<1x128xf32, #tpu.memory_space<vmem>>, vector<1x128xf32>
      %17 = vector.broadcast %16 : vector<1x128xf32> to vector<256x128xf32>
      %18 = arith.addf %15, %17 : vector<256x128xf32>
      %c0_13 = arith.constant 0 : index
      %c0_14 = arith.constant 0 : index
      %19 = vector.load %arg5[%c0_13, %c0_14] : memref<256x128xf32, #tpu.memory_space<vmem>>, vector<256x128xf32>
      tpu.vector_store %arg5[%c0_13, %c0_14], %18 {strides = array<i32>} : memref<256x128xf32, #tpu.memory_space<vmem>>, vector<256x128xf32>,
    } else {
    }
    return
  }
  func.func @transform_0(%arg0: i32, %arg1: i32) -> (i32, i32) {
    %c0_i32 = arith.constant 0 : i32
    return %arg0, %arg1 : i32, i32
  }
  func.func @transform_1(%arg0: i32, %arg1: i32) -> (i32, i32) {
    %c0_i32 = arith.constant 0 : i32
    %c0_i32_0 = arith.constant 0 : i32
    %c0_i32_1 = arith.constant 0 : i32
    return %c0_i32, %c0_i32_0 : i32, i32
  }
  func.func @transform_2(%arg0: i32, %arg1: i32) -> (i32, i32) {
    %c0_i32 = arith.constant 0 : i32
    %c0_i32_0 = arith.constant 0 : i32
    %c0_i32_1 = arith.constant 0 : i32
    return %c0_i32, %c0_i32_0 : i32, i32
  }
  func.func @transform_3(%arg0: i32, %arg1: i32) -> (i32, i32) {
    %c0_i32 = arith.constant 0 : i32
    %c0_i32_0 = arith.constant 0 : i32
    return %arg0, %c0_i32 : i32, i32
  }
}

module attributes {stable_mosaic.version = 11 : i64} {
  func.func @_propagate_fused_kernel(%arg0: i32, %arg1: i32, %arg2: memref<256x256xbf16, #tpu.memory_space<vmem>>, %arg3: memref<256x128xbf16, #tpu.memory_space<vmem>>, %arg4: memref<1x128xf32, #tpu.memory_space<vmem>>, %arg5: memref<128x128xbf16, #tpu.memory_space<vmem>>, %arg6: memref<256x128xbf16, #tpu.memory_space<vmem>>, %arg7: memref<256x128xf32, #tpu.memory_space<vmem>>) attributes {dimension_semantics = [#tpu.dimension_semantics<parallel>, #tpu.dimension_semantics<arbitrary>], iteration_bounds = array<i64: 1, 1>, scalar_prefetch = 0 : i64, scratch_operands = 1 : i64, tpu.core_type = #tpu.core_type<tc>, window_params = [{transform_indices = @transform_0, window_bounds = array<i64: 256, 256>}, {pipeline_mode = #tpu.pipeline_mode<synchronous>, transform_indices = @transform_1, window_bounds = array<i64: 256, 128>}, {pipeline_mode = #tpu.pipeline_mode<synchronous>, transform_indices = @transform_2, window_bounds = array<i64: 1, 128>}, {pipeline_mode = #tpu.pipeline_mode<synchronous>, transform_indices = @transform_3, window_bounds = array<i64: 128, 128>}, {transform_indices = @transform_4, window_bounds = array<i64: 256, 128>}]} {
    %c0_i32 = arith.constant 0 : i32
    %0 = arith.cmpi eq, %arg1, %c0_i32 : i32
    %1 = arith.extui %0 : i1 to i32
    %c0_i32_0 = arith.constant 0 : i32
    %2 = arith.cmpi ne, %1, %c0_i32_0 : i32
    scf.if %2 {
      %cst_9 = arith.constant 0.000000e+00 : f32
      %15 = vector.broadcast %cst_9 : f32 to vector<256x128xf32>
      %c0_10 = arith.constant 0 : index
      %c0_11 = arith.constant 0 : index
      %16 = vector.load %arg7[%c0_10, %c0_11] : memref<256x128xf32, #tpu.memory_space<vmem>>, vector<256x128xf32>
      tpu.vector_store %arg7[%c0_10, %c0_11], %15 {strides = array<i32>} : memref<256x128xf32, #tpu.memory_space<vmem>>, vector<256x128xf32>,
    } else {
    }
    %c256_i32 = arith.constant 256 : i32
    %3 = arith.muli %arg1, %c256_i32 : i32
    %4 = tpu.assume_multiple %3, 256 : i32
    %c0 = arith.constant 0 : index
    %c0_1 = arith.constant 0 : index
    %5 = vector.load %arg7[%c0, %c0_1] : memref<256x128xf32, #tpu.memory_space<vmem>>, vector<256x128xf32>
    %c0_2 = arith.constant 0 : index
    %c0_3 = arith.constant 0 : index
    %6 = vector.load %arg2[%c0_2, %c0_3] : memref<256x256xbf16, #tpu.memory_space<vmem>>, vector<256x256xbf16>
    %7 = arith.index_cast %4 : i32 to index
    %c0_4 = arith.constant 0 : index
    %8 = vector.load %arg3[%7, %c0_4] : memref<256x128xbf16, #tpu.memory_space<vmem>>, vector<256x128xbf16>
    %cst = arith.constant dense<0.000000e+00> : vector<256x128xf32>
    %9 = tpu.matmul %6, %8, %cst {dimension_numbers = #tpu.dot_dimension_numbers<[1], [0], [0], [1], [0, 0, 1, 1], [], []>} : vector<256x256xbf16>, vector<256x128xbf16>, vector<256x128xf32> -> vector<256x128xf32>
    %10 = arith.addf %5, %9 : vector<256x128xf32>
    %c0_5 = arith.constant 0 : index
    %c0_6 = arith.constant 0 : index
    %11 = vector.load %arg7[%c0_5, %c0_6] : memref<256x128xf32, #tpu.memory_space<vmem>>, vector<256x128xf32>
    tpu.vector_store %arg7[%c0_5, %c0_6], %10 {strides = array<i32>} : memref<256x128xf32, #tpu.memory_space<vmem>>, vector<256x128xf32>,
    %c0_i32_7 = arith.constant 0 : i32
    %12 = arith.cmpi eq, %arg1, %c0_i32_7 : i32
    %13 = arith.extui %12 : i1 to i32
    %c0_i32_8 = arith.constant 0 : i32
    %14 = arith.cmpi ne, %13, %c0_i32_8 : i32
    scf.if %14 {
      %c0_9 = arith.constant 0 : index
      %c0_10 = arith.constant 0 : index
      %15 = vector.load %arg7[%c0_9, %c0_10] : memref<256x128xf32, #tpu.memory_space<vmem>>, vector<256x128xf32>
      %c0_11 = arith.constant 0 : index
      %c0_12 = arith.constant 0 : index
      %16 = vector.load %arg4[%c0_11, %c0_12] : memref<1x128xf32, #tpu.memory_space<vmem>>, vector<1x128xf32>
      %17 = vector.broadcast %16 : vector<1x128xf32> to vector<256x128xf32>
      %18 = arith.addf %15, %17 : vector<256x128xf32>
      %cst_13 = arith.constant 0.000000e+00 : f32
      %19 = vector.broadcast %cst_13 : f32 to vector<256x128xf32>
      %20 = arith.maximumf %18, %19 : vector<256x128xf32>
      %21 = arith.truncf %20 : vector<256x128xf32> to vector<256x128xbf16>
      %c0_14 = arith.constant 0 : index
      %c0_15 = arith.constant 0 : index
      %22 = vector.load %arg5[%c0_14, %c0_15] : memref<128x128xbf16, #tpu.memory_space<vmem>>, vector<128x128xbf16>
      %cst_16 = arith.constant dense<0.000000e+00> : vector<256x128xf32>
      %23 = tpu.matmul %21, %22, %cst_16 {dimension_numbers = #tpu.dot_dimension_numbers<[1], [0], [0], [1], [0, 0, 1, 1], [], []>} : vector<256x128xbf16>, vector<128x128xbf16>, vector<256x128xf32> -> vector<256x128xf32>
      %24 = arith.truncf %23 : vector<256x128xf32> to vector<256x128xbf16>
      %c0_17 = arith.constant 0 : index
      %c0_18 = arith.constant 0 : index
      %25 = vector.load %arg6[%c0_17, %c0_18] : memref<256x128xbf16, #tpu.memory_space<vmem>>, vector<256x128xbf16>
      tpu.vector_store %arg6[%c0_17, %c0_18], %24 {strides = array<i32>} : memref<256x128xbf16, #tpu.memory_space<vmem>>, vector<256x128xbf16>,
    } else {
    }
    return
  }
  func.func @transform_0(%arg0: i32, %arg1: i32) -> (i32, i32) {
    %c0_i32 = arith.constant 0 : i32
    return %arg0, %arg1 : i32, i32
  }
  func.func @transform_1(%arg0: i32, %arg1: i32) -> (i32, i32) {
    %c0_i32 = arith.constant 0 : i32
    %c0_i32_0 = arith.constant 0 : i32
    %c0_i32_1 = arith.constant 0 : i32
    return %c0_i32, %c0_i32_0 : i32, i32
  }
  func.func @transform_2(%arg0: i32, %arg1: i32) -> (i32, i32) {
    %c0_i32 = arith.constant 0 : i32
    %c0_i32_0 = arith.constant 0 : i32
    %c0_i32_1 = arith.constant 0 : i32
    return %c0_i32, %c0_i32_0 : i32, i32
  }
  func.func @transform_3(%arg0: i32, %arg1: i32) -> (i32, i32) {
    %c0_i32 = arith.constant 0 : i32
    %c0_i32_0 = arith.constant 0 : i32
    %c0_i32_1 = arith.constant 0 : i32
    return %c0_i32, %c0_i32_0 : i32, i32
  }
  func.func @transform_4(%arg0: i32, %arg1: i32) -> (i32, i32) {
    %c0_i32 = arith.constant 0 : i32
    %c0_i32_0 = arith.constant 0 : i32
    return %arg0, %c0_i32 : i32, i32
  }
}

</mosaic_0001>

<llo_original>
// kernel: gcn_forward.3
$region0: #{gcn_forward.3}
  #allocation0 [shape = 'u32[]', space=smem, size = 0x4, offset = 0x4, fixed_abs, tag = 'smem constant byte address 0x4 - core index']
  #allocation1 [shape = 'u32[144,128]{1,0:T(1,128)}', space=vmem, size = 0x12000, scoped, tag = 'internal scratch']
  #allocation2 [shape = 'f32[256,128]{1,0:T(8,128)}', space=vmem, size = 0x20000, scoped, tag = 'scratch operand']
  %s0 = inlined_call_operand.vmem [shape: bf16[256,256], index: 0, kind: input, shape index: {}]
  %s1 = inlined_call_operand.vmem [shape: bf16[256,128], index: 1, kind: input, shape index: {}]
  %s2 = inlined_call_operand.vmem [shape: f32[1,128], index: 2, kind: input, shape index: {}]
  %s3 = inlined_call_operand.vmem [shape: f32[256,128], index: 3, kind: output, shape index: {}]
  %s4 = sld [smem:[#allocation0]]
  $region30: #{gcn_forward.3} parent=0
    _
  %s6 = ssub.s32 1, %s4
  %s7 = scalar_select 0, %s6, %s4
  // Predicated region
  $region2: #{gcn_forward.3} parent=0 // pred_check
    _
  $region3: #{gcn_forward.3} parent=0 // pred_check_branch
    %9 = sbr.rel (0) target = $region5
  $region4: #{gcn_forward.3} parent=0 // pred_region
    _
  $region5: #{gcn_forward.3} parent=0 // pred_fallthru
    _
  // Predicated region
  $region6: #{gcn_forward.3} parent=0 // pred_check
    _
  $region7: #{gcn_forward.3} parent=0 // pred_check_branch
    %11 = sbr.rel (0) target = $region9
  $region8: #{gcn_forward.3} parent=0 // pred_region
    _
  $region9: #{gcn_forward.3} parent=0 // pred_fallthru
    _
  // Predicated region
  $region10: #{gcn_forward.3} parent=0 // pred_check
    _
  $region11: #{gcn_forward.3} parent=0 // pred_check_branch
    %13 = sbr.rel (0) target = $region13
  $region12: #{gcn_forward.3} parent=0 // pred_region
    _
  $region13: #{gcn_forward.3} parent=0 // pred_fallthru
    _
  %p15 = scmp.eq.s32.totalorder 0, 0
  // Predicated region
  $region14: #{gcn_forward.3} parent=0 // pred_check
    %p16 = pneg %p15
  $region15: #{gcn_forward.3} parent=0 // pred_check_branch
    %18 = sbr.rel (%p16) target = $region17
  $region16: #{gcn_forward.3} parent=0 // pred_region
    %19 = vst [vmem:[#allocation2] sm:$0xff] 0.0
    %20 = vst [vmem:[#allocation2 + $0x8] sm:$0xff] 0.0
    %21 = vst [vmem:[#allocation2 + $0x10] sm:$0xff] 0.0
    %22 = vst [vmem:[#allocation2 + $0x18] sm:$0xff] 0.0
    %23 = vst [vmem:[#allocation2 + $0x20] sm:$0xff] 0.0
    %24 = vst [vmem:[#allocation2 + $0x28] sm:$0xff] 0.0
    %25 = vst [vmem:[#allocation2 + $0x30] sm:$0xff] 0.0
    %26 = vst [vmem:[#allocation2 + $0x38] sm:$0xff] 0.0
    %27 = vst [vmem:[#allocation2 + $0x40] sm:$0xff] 0.0
    %28 = vst [vmem:[#allocation2 + $0x48] sm:$0xff] 0.0
    %29 = vst [vmem:[#allocation2 + $0x50] sm:$0xff] 0.0
    %30 = vst [vmem:[#allocation2 + $0x58] sm:$0xff] 0.0
    %31 = vst [vmem:[#allocation2 + $0x60] sm:$0xff] 0.0
    %32 = vst [vmem:[#allocation2 + $0x68] sm:$0xff] 0.0
    %33 = vst [vmem:[#allocation2 + $0x70] sm:$0xff] 0.0
    %34 = vst [vmem:[#allocation2 + $0x78] sm:$0xff] 0.0
    %35 = vst [vmem:[#allocation2 + $0x80] sm:$0xff] 0.0
    %36 = vst [vmem:[#allocation2 + $0x88] sm:$0xff] 0.0
    %37 = vst [vmem:[#allocation2 + $0x90] sm:$0xff] 0.0
    %38 = vst [vmem:[#allocation2 + $0x98] sm:$0xff] 0.0
    %39 = vst [vmem:[#allocation2 + $0xa0] sm:$0xff] 0.0
    %40 = vst [vmem:[#allocation2 + $0xa8] sm:$0xff] 0.0
    %41 = vst [vmem:[#allocation2 + $0xb0] sm:$0xff] 0.0
    %42 = vst [vmem:[#allocation2 + $0xb8] sm:$0xff] 0.0
    %43 = vst [vmem:[#allocation2 + $0xc0] sm:$0xff] 0.0
    %44 = vst [vmem:[#allocation2 + $0xc8] sm:$0xff] 0.0
    %45 = vst [vmem:[#allocation2 + $0xd0] sm:$0xff] 0.0
    %46 = vst [vmem:[#allocation2 + $0xd8] sm:$0xff] 0.0
    %47 = vst [vmem:[#allocation2 + $0xe0] sm:$0xff] 0.0
    %48 = vst [vmem:[#allocation2 + $0xe8] sm:$0xff] 0.0
    %49 = vst [vmem:[#allocation2 + $0xf0] sm:$0xff] 0.0
    %50 = vst [vmem:[#allocation2 + $0xf8] sm:$0xff] 0.0
  $region17: #{gcn_forward.3} parent=0 // pred_fallthru
    _
  %s51 = smul.u32 0, 256
  %v52 = vld [vmem:[#allocation2] sm:$0xff]
  %v53 = vld [vmem:[#allocation2 + $0x8] sm:$0xff]
  %v54 = vld [vmem:[#allocation2 + $0x10] sm:$0xff]
  %v55 = vld [vmem:[#allocation2 + $0x18] sm:$0xff]
  %v56 = vld [vmem:[#allocation2 + $0x20] sm:$0xff]
  %v57 = vld [vmem:[#allocation2 + $0x28] sm:$0xff]
  %v58 = vld [vmem:[#allocation2 + $0x30] sm:$0xff]
  %v59 = vld [vmem:[#allocation2 + $0x38] sm:$0xff]
  %v60 = vld [vmem:[#allocation2 + $0x40] sm:$0xff]
  %v61 = vld [vmem:[#allocation2 + $0x48] sm:$0xff]
  %v62 = vld [vmem:[#allocation2 + $0x50] sm:$0xff]
  %v63 = vld [vmem:[#allocation2 + $0x58] sm:$0xff]
  %v64 = vld [vmem:[#allocation2 + $0x60] sm:$0xff]
  %v65 = vld [vmem:[#allocation2 + $0x68] sm:$0xff]
  %v66 = vld [vmem:[#allocation2 + $0x70] sm:$0xff]
  %v67 = vld [vmem:[#allocation2 + $0x78] sm:$0xff]
  %v68 = vld [vmem:[#allocation2 + $0x80] sm:$0xff]
  %v69 = vld [vmem:[#allocation2 + $0x88] sm:$0xff]
  %v70 = vld [vmem:[#allocation2 + $0x90] sm:$0xff]
  %v71 = vld [vmem:[#allocation2 + $0x98] sm:$0xff]
  %v72 = vld [vmem:[#allocation2 + $0xa0] sm:$0xff]
  %v73 = vld [vmem:[#allocation2 + $0xa8] sm:$0xff]
  %v74 = vld [vmem:[#allocation2 + $0xb0] sm:$0xff]
  %v75 = vld [vmem:[#allocation2 + $0xb8] sm:$0xff]
  %v76 = vld [vmem:[#allocation2 + $0xc0] sm:$0xff]
  %v77 = vld [vmem:[#allocation2 + $0xc8] sm:$0xff]
  %v78 = vld [vmem:[#allocation2 + $0xd0] sm:$0xff]
  %v79 = vld [vmem:[#allocation2 + $0xd8] sm:$0xff]
  %v80 = vld [vmem:[#allocation2 + $0xe0] sm:$0xff]
  %v81 = vld [vmem:[#allocation2 + $0xe8] sm:$0xff]
  %v82 = vld [vmem:[#allocation2 + $0xf0] sm:$0xff]
  %v83 = vld [vmem:[#allocation2 + $0xf8] sm:$0xff]
  %v84 = vld [vmem:[%s0] sm:$0xff]
  %v85 = vld [vmem:[%s0 + $0x8] sm:$0xff]
  %v86 = vld [vmem:[%s0 + $0x10] sm:$0xff]
  %v87 = vld [vmem:[%s0 + $0x18] sm:$0xff]
  %v88 = vld [vmem:[%s0 + $0x20] sm:$0xff]
  %v89 = vld [vmem:[%s0 + $0x28] sm:$0xff]
  %v90 = vld [vmem:[%s0 + $0x30] sm:$0xff]
  %v91 = vld [vmem:[%s0 + $0x38] sm:$0xff]
  %v92 = vld [vmem:[%s0 + $0x40] sm:$0xff]
  %v93 = vld [vmem:[%s0 + $0x48] sm:$0xff]
  %v94 = vld [vmem:[%s0 + $0x50] sm:$0xff]
  %v95 = vld [vmem:[%s0 + $0x58] sm:$0xff]
  %v96 = vld [vmem:[%s0 + $0x60] sm:$0xff]
  %v97 = vld [vmem:[%s0 + $0x68] sm:$0xff]
  %v98 = vld [vmem:[%s0 + $0x70] sm:$0xff]
  %v99 = vld [vmem:[%s0 + $0x78] sm:$0xff]
  %v100 = vld [vmem:[%s0 + $0x80] sm:$0xff]
  %v101 = vld [vmem:[%s0 + $0x88] sm:$0xff]
  %v102 = vld [vmem:[%s0 + $0x90] sm:$0xff]
  %v103 = vld [vmem:[%s0 + $0x98] sm:$0xff]
  %v104 = vld [vmem:[%s0 + $0xa0] sm:$0xff]
  %v105 = vld [vmem:[%s0 + $0xa8] sm:$0xff]
  %v106 = vld [vmem:[%s0 + $0xb0] sm:$0xff]
  %v107 = vld [vmem:[%s0 + $0xb8] sm:$0xff]
  %v108 = vld [vmem:[%s0 + $0xc0] sm:$0xff]
  %v109 = vld [vmem:[%s0 + $0xc8] sm:$0xff]
  %v110 = vld [vmem:[%s0 + $0xd0] sm:$0xff]
  %v111 = vld [vmem:[%s0 + $0xd8] sm:$0xff]
  %v112 = vld [vmem:[%s0 + $0xe0] sm:$0xff]
  %v113 = vld [vmem:[%s0 + $0xe8] sm:$0xff]
  %v114 = vld [vmem:[%s0 + $0xf0] sm:$0xff]
  %v115 = vld [vmem:[%s0 + $0xf8] sm:$0xff]
  %s116 = sshra.s32 %s51, 3
  %s117 = sand.u32 %s51, 7
  %s118 = smul.addr %s116, 4
  %s119 = scalar_lea.vmem %s1, %s118
  %v120 = vld [vmem:[%s119] sm:$0xf]
  %v121 = vld [vmem:[%s119 + $0x4] sm:$0xf]
  %v122 = vld [vmem:[%s119 + $0x8] sm:$0xf]
  %v123 = vld [vmem:[%s119 + $0xc] sm:$0xf]
  %v124 = vld [vmem:[%s119 + $0x10] sm:$0xf]
  %v125 = vld [vmem:[%s119 + $0x14] sm:$0xf]
  %v126 = vld [vmem:[%s119 + $0x18] sm:$0xf]
  %v127 = vld [vmem:[%s119 + $0x1c] sm:$0xf]
  %v128 = vld [vmem:[%s119 + $0x20] sm:$0xf]
  %v129 = vld [vmem:[%s119 + $0x24] sm:$0xf]
  %v130 = vld [vmem:[%s119 + $0x28] sm:$0xf]
  %v131 = vld [vmem:[%s119 + $0x2c] sm:$0xf]
  %v132 = vld [vmem:[%s119 + $0x30] sm:$0xf]
  %v133 = vld [vmem:[%s119 + $0x34] sm:$0xf]
  %v134 = vld [vmem:[%s119 + $0x38] sm:$0xf]
  %v135 = vld [vmem:[%s119 + $0x3c] sm:$0xf]
  %v136 = vld [vmem:[%s119 + $0x40] sm:$0xf]
  %v137 = vld [vmem:[%s119 + $0x44] sm:$0xf]
  %v138 = vld [vmem:[%s119 + $0x48] sm:$0xf]
  %v139 = vld [vmem:[%s119 + $0x4c] sm:$0xf]
  %v140 = vld [vmem:[%s119 + $0x50] sm:$0xf]
  %v141 = vld [vmem:[%s119 + $0x54] sm:$0xf]
  %v142 = vld [vmem:[%s119 + $0x58] sm:$0xf]
  %v143 = vld [vmem:[%s119 + $0x5c] sm:$0xf]
  %v144 = vld [vmem:[%s119 + $0x60] sm:$0xf]
  %v145 = vld [vmem:[%s119 + $0x64] sm:$0xf]
  %v146 = vld [vmem:[%s119 + $0x68] sm:$0xf]
  %v147 = vld [vmem:[%s119 + $0x6c] sm:$0xf]
  %v148 = vld [vmem:[%s119 + $0x70] sm:$0xf]
  %v149 = vld [vmem:[%s119 + $0x74] sm:$0xf]
  %v150 = vld [vmem:[%s119 + $0x78] sm:$0xf]
  %v151 = vld [vmem:[%s119 + $0x7c] sm:$0xf]
  %v184 = vunpack.c.l.b16 %v84
  %v185 = vunpack.c.h.b16 %v84
  %v186 = vunpack.c.l.b16 %v85
  %v187 = vunpack.c.h.b16 %v85
  %v188 = vunpack.c.l.b16 %v86
  %v189 = vunpack.c.h.b16 %v86
  %v190 = vunpack.c.l.b16 %v87
  %v191 = vunpack.c.h.b16 %v87
  %v192 = vunpack.c.l.b16 %v88
  %v193 = vunpack.c.h.b16 %v88
  %v194 = vunpack.c.l.b16 %v89
  %v195 = vunpack.c.h.b16 %v89
  %v196 = vunpack.c.l.b16 %v90
  %v197 = vunpack.c.h.b16 %v90
  %v198 = vunpack.c.l.b16 %v91
  %v199 = vunpack.c.h.b16 %v91
  %v200 = vunpack.c.l.b16 %v92
  %v201 = vunpack.c.h.b16 %v92
  %v202 = vunpack.c.l.b16 %v93
  %v203 = vunpack.c.h.b16 %v93
  %v204 = vunpack.c.l.b16 %v94
  %v205 = vunpack.c.h.b16 %v94
  %v206 = vunpack.c.l.b16 %v95
  %v207 = vunpack.c.h.b16 %v95
  %v208 = vunpack.c.l.b16 %v96
  %v209 = vunpack.c.h.b16 %v96
  %v210 = vunpack.c.l.b16 %v97
  %v211 = vunpack.c.h.b16 %v97
  %v212 = vunpack.c.l.b16 %v98
  %v213 = vunpack.c.h.b16 %v98
  %v214 = vunpack.c.l.b16 %v99
  %v215 = vunpack.c.h.b16 %v99
  %v216 = vunpack.c.l.b16 %v100
  %v217 = vunpack.c.h.b16 %v100
  %v218 = vunpack.c.l.b16 %v101
  %v219 = vunpack.c.h.b16 %v101
  %v220 = vunpack.c.l.b16 %v102
  %v221 = vunpack.c.h.b16 %v102
  %v222 = vunpack.c.l.b16 %v103
  %v223 = vunpack.c.h.b16 %v103
  %v224 = vunpack.c.l.b16 %v104
  %v225 = vunpack.c.h.b16 %v104
  %v226 = vunpack.c.l.b16 %v105
  %v227 = vunpack.c.h.b16 %v105
  %v228 = vunpack.c.l.b16 %v106
  %v229 = vunpack.c.h.b16 %v106
  %v230 = vunpack.c.l.b16 %v107
  %v231 = vunpack.c.h.b16 %v107
  %v232 = vunpack.c.l.b16 %v108
  %v233 = vunpack.c.h.b16 %v108
  %v234 = vunpack.c.l.b16 %v109
  %v235 = vunpack.c.h.b16 %v109
  %v236 = vunpack.c.l.b16 %v110
  %v237 = vunpack.c.h.b16 %v110
  %v238 = vunpack.c.l.b16 %v111
  %v239 = vunpack.c.h.b16 %v111
  %v240 = vunpack.c.l.b16 %v112
  %v241 = vunpack.c.h.b16 %v112
  %v242 = vunpack.c.l.b16 %v113
  %v243 = vunpack.c.h.b16 %v113
  %v244 = vunpack.c.l.b16 %v114
  %v245 = vunpack.c.h.b16 %v114
  %v246 = vunpack.c.l.b16 %v115
  %v247 = vunpack.c.h.b16 %v115
  %v248 = vpack.c.b16 %v186, %v184
  %v249 = vpack.c.b16 %v187, %v185
  %v250 = vpack.c.b16 %v190, %v188
  %v251 = vpack.c.b16 %v191, %v189
  %v252 = vpack.c.b16 %v194, %v192
  %v253 = vpack.c.b16 %v195, %v193
  %v254 = vpack.c.b16 %v198, %v196
  %v255 = vpack.c.b16 %v199, %v197
  %v256 = vpack.c.b16 %v202, %v200
  %v257 = vpack.c.b16 %v203, %v201
  %v258 = vpack.c.b16 %v206, %v204
  %v259 = vpack.c.b16 %v207, %v205
  %v260 = vpack.c.b16 %v210, %v208
  %v261 = vpack.c.b16 %v211, %v209
  %v262 = vpack.c.b16 %v214, %v212
  %v263 = vpack.c.b16 %v215, %v213
  %v264 = vpack.c.b16 %v218, %v216
  %v265 = vpack.c.b16 %v219, %v217
  %v266 = vpack.c.b16 %v222, %v220
  %v267 = vpack.c.b16 %v223, %v221
  %v268 = vpack.c.b16 %v226, %v224
  %v269 = vpack.c.b16 %v227, %v225
  %v270 = vpack.c.b16 %v230, %v228
  %v271 = vpack.c.b16 %v231, %v229
  %v272 = vpack.c.b16 %v234, %v232
  %v273 = vpack.c.b16 %v235, %v233
  %v274 = vpack.c.b16 %v238, %v236
  %v275 = vpack.c.b16 %v239, %v237
  %v276 = vpack.c.b16 %v242, %v240
  %v277 = vpack.c.b16 %v243, %v241
  %v278 = vpack.c.b16 %v246, %v244
  %v279 = vpack.c.b16 %v247, %v245
  %v344 = vunpack.c.l.b16 %v120
  %v345 = vunpack.c.l.b16 %v121
  %v346 = vunpack.c.l.b16 %v122
  %v347 = vunpack.c.l.b16 %v123
  %v348 = vunpack.c.l.b16 %v124
  %v349 = vunpack.c.l.b16 %v125
  %v350 = vunpack.c.l.b16 %v126
  %v351 = vunpack.c.l.b16 %v127
  %v352 = vunpack.c.l.b16 %v128
  %v353 = vunpack.c.l.b16 %v129
  %v354 = vunpack.c.l.b16 %v130
  %v355 = vunpack.c.l.b16 %v131
  %v356 = vunpack.c.l.b16 %v132
  %v357 = vunpack.c.l.b16 %v133
  %v358 = vunpack.c.l.b16 %v134
  %v359 = vunpack.c.l.b16 %v135
  %v360 = vunpack.c.l.b16 %v136
  %v361 = vunpack.c.l.b16 %v137
  %v362 = vunpack.c.l.b16 %v138
  %v363 = vunpack.c.l.b16 %v139
  %v364 = vunpack.c.l.b16 %v140
  %v365 = vunpack.c.l.b16 %v141
  %v366 = vunpack.c.l.b16 %v142
  %v367 = vunpack.c.l.b16 %v143
  %v368 = vunpack.c.l.b16 %v144
  %v369 = vunpack.c.l.b16 %v145
  %v370 = vunpack.c.l.b16 %v146
  %v371 = vunpack.c.l.b16 %v147
  %v372 = vunpack.c.l.b16 %v148
  %v373 = vunpack.c.l.b16 %v149
  %v374 = vunpack.c.l.b16 %v150
  %v375 = vunpack.c.l.b16 %v151
  %v376 = vpack.c.b16 %v345, %v344
  %v377 = vpack.c.b16 %v347, %v346
  %v378 = vpack.c.b16 %v349, %v348
  %v379 = vpack.c.b16 %v351, %v350
  %v380 = vpack.c.b16 %v353, %v352
  %v381 = vpack.c.b16 %v355, %v354
  %v382 = vpack.c.b16 %v357, %v356
  %v383 = vpack.c.b16 %v359, %v358
  %v384 = vpack.c.b16 %v361, %v360
  %v385 = vpack.c.b16 %v363, %v362
  %v386 = vpack.c.b16 %v365, %v364
  %v387 = vpack.c.b16 %v367, %v366
  %v388 = vpack.c.b16 %v369, %v368
  %v389 = vpack.c.b16 %v371, %v370
  %v390 = vpack.c.b16 %v373, %v372
  %v391 = vpack.c.b16 %v375, %v374
  %408 = vmatprep.subr.bf16.mxu0 0
  %409 = vmatpush1.bf16.msra.mxu0 %v376
  %410 = vmatprep.subr.bf16.mxu0 0
  %411 = vmatpush1.bf16.msra.mxu0 %v377
  %412 = vmatprep.subr.bf16.mxu0 0
  %413 = vmatpush1.bf16.msra.mxu0 %v378
  %414 = vmatprep.subr.bf16.mxu0 0
  %415 = vmatpush1.bf16.msra.mxu0 %v379
  %416 = vmatprep.subr.bf16.mxu0 0
  %417 = vmatpush1.bf16.msra.mxu0 %v380
  %418 = vmatprep.subr.bf16.mxu0 0
  %419 = vmatpush1.bf16.msra.mxu0 %v381
  %420 = vmatprep.subr.bf16.mxu0 0
  %421 = vmatpush1.bf16.msra.mxu0 %v382
  %422 = vmatprep.subr.bf16.mxu0 0
  %423 = vmatpush1.bf16.msra.mxu0 %v383
  %424 = vmatprep.subr.bf16.mxu0 0
  %425 = vmatpush1.bf16.msra.mxu0 %v384
  %426 = vmatprep.subr.bf16.mxu0 0
  %427 = vmatpush1.bf16.msra.mxu0 %v385
  %428 = vmatprep.subr.bf16.mxu0 0
  %429 = vmatpush1.bf16.msra.mxu0 %v386
  %430 = vmatprep.subr.bf16.mxu0 0
  %431 = vmatpush1.bf16.msra.mxu0 %v387
  %432 = vmatprep.subr.bf16.mxu0 0
  %433 = vmatpush1.bf16.msra.mxu0 %v388
  %434 = vmatprep.subr.bf16.mxu0 0
  %435 = vmatpush1.bf16.msra.mxu0 %v389
  %436 = vmatprep.subr.bf16.mxu0 0
  %437 = vmatpush1.bf16.msra.mxu0 %v390
  %438 = vmatprep.subr.bf16.mxu0 0
  %439 = vmatpush1.bf16.msra.mxu0 %v391
  %440 = vmatprep.mubr.bf16.mxu0 %v249
  %441 = vmatmul.mubr.bf16.gmra.mrb[0].mxu0 %v248
  %v442 = vpop.f32.mrb[0].mxu0
  %v443 = vadd.f32 0.0, %v442
  %v444 = vpop.f32.mrb[0].mxu0
  %v445 = vpop.f32.mrb[0].mxu0
  %v446 = vadd.f32 0.0, %v445
  %v447 = vpop.f32.mrb[0].mxu0
  %448 = vmatprep.mubr.bf16.mxu0 %v251
  %449 = vmatmul.mubr.bf16.gmra.mrb[0].mxu0 %v250
  %v450 = vpop.f32.mrb[0].mxu0
  %v451 = vadd.f32 0.0, %v450
  %v452 = vpop.f32.mrb[0].mxu0
  %v453 = vpop.f32.mrb[0].mxu0
  %v454 = vadd.f32 0.0, %v453
  %v455 = vpop.f32.mrb[0].mxu0
  %456 = vmatprep.mubr.bf16.mxu0 %v253
  %457 = vmatmul.mubr.bf16.gmra.mrb[0].mxu0 %v252
  %v458 = vpop.f32.mrb[0].mxu0
  %v459 = vadd.f32 0.0, %v458
  %v460 = vpop.f32.mrb[0].mxu0
  %v461 = vpop.f32.mrb[0].mxu0
  %v462 = vadd.f32 0.0, %v461
  %v463 = vpop.f32.mrb[0].mxu0
  %464 = vmatprep.mubr.bf16.mxu0 %v255
  %465 = vmatmul.mubr.bf16.gmra.mrb[0].mxu0 %v254
  %v466 = vpop.f32.mrb[0].mxu0
  %v467 = vadd.f32 0.0, %v466
  %v468 = vpop.f32.mrb[0].mxu0
  %v469 = vpop.f32.mrb[0].mxu0
  %v470 = vadd.f32 0.0, %v469
  %v471 = vpop.f32.mrb[0].mxu0
  %472 = vmatprep.mubr.bf16.mxu0 %v257
  %473 = vmatmul.mubr.bf16.gmra.mrb[0].mxu0 %v256
  %v474 = vpop.f32.mrb[0].mxu0
  %v475 = vadd.f32 0.0, %v474
  %v476 = vpop.f32.mrb[0].mxu0
  %v477 = vpop.f32.mrb[0].mxu0
  %v478 = vadd.f32 0.0, %v477
  %v479 = vpop.f32.mrb[0].mxu0
  %480 = vmatprep.mubr.bf16.mxu0 %v259
  %481 = vmatmul.mubr.bf16.gmra.mrb[0].mxu0 %v258
  %v482 = vpop.f32.mrb[0].mxu0
  %v483 = vadd.f32 0.0, %v482
  %v484 = vpop.f32.mrb[0].mxu0
  %v485 = vpop.f32.mrb[0].mxu0
  %v486 = vadd.f32 0.0, %v485
  %v487 = vpop.f32.mrb[0].mxu0
  %488 = vmatprep.mubr.bf16.mxu0 %v261
  %489 = vmatmul.mubr.bf16.gmra.mrb[0].mxu0 %v260
  %v490 = vpop.f32.mrb[0].mxu0
  %v491 = vadd.f32 0.0, %v490
  %v492 = vpop.f32.mrb[0].mxu0
  %v493 = vpop.f32.mrb[0].mxu0
  %v494 = vadd.f32 0.0, %v493
  %v495 = vpop.f32.mrb[0].mxu0
  %496 = vmatprep.mubr.bf16.mxu0 %v263
  %497 = vmatmul.mubr.bf16.gmra.mrb[0].mxu0 %v262
  %v498 = vpop.f32.mrb[0].mxu0
  %v499 = vadd.f32 0.0, %v498
  %v500 = vpop.f32.mrb[0].mxu0
  %v501 = vpop.f32.mrb[0].mxu0
  %v502 = vadd.f32 0.0, %v501
  %v503 = vpop.f32.mrb[0].mxu0
  %504 = vmatprep.mubr.bf16.mxu0 %v265
  %505 = vmatmul.mubr.bf16.gmra.mrb[0].mxu0 %v264
  %v506 = vpop.f32.mrb[0].mxu0
  %v507 = vadd.f32 0.0, %v506
  %v508 = vpop.f32.mrb[0].mxu0
  %v509 = vpop.f32.mrb[0].mxu0
  %v510 = vadd.f32 0.0, %v509
  %v511 = vpop.f32.mrb[0].mxu0
  %512 = vmatprep.mubr.bf16.mxu0 %v267
  %513 = vmatmul.mubr.bf16.gmra.mrb[0].mxu0 %v266
  %v514 = vpop.f32.mrb[0].mxu0
  %v515 = vadd.f32 0.0, %v514
  %v516 = vpop.f32.mrb[0].mxu0
  %v517 = vpop.f32.mrb[0].mxu0
  %v518 = vadd.f32 0.0, %v517
  %v519 = vpop.f32.mrb[0].mxu0
  %520 = vmatprep.mubr.bf16.mxu0 %v269
  %521 = vmatmul.mubr.bf16.gmra.mrb[0].mxu0 %v268
  %v522 = vpop.f32.mrb[0].mxu0
  %v523 = vadd.f32 0.0, %v522
  %v524 = vpop.f32.mrb[0].mxu0
  %v525 = vpop.f32.mrb[0].mxu0
  %v526 = vadd.f32 0.0, %v525
  %v527 = vpop.f32.mrb[0].mxu0
  %528 = vmatprep.mubr.bf16.mxu0 %v271
  %529 = vmatmul.mubr.bf16.gmra.mrb[0].mxu0 %v270
  %v530 = vpop.f32.mrb[0].mxu0
  %v531 = vadd.f32 0.0, %v530
  %v532 = vpop.f32.mrb[0].mxu0
  %v533 = vpop.f32.mrb[0].mxu0
  %v534 = vadd.f32 0.0, %v533
  %v535 = vpop.f32.mrb[0].mxu0
  %536 = vmatprep.mubr.bf16.mxu0 %v273
  %537 = vmatmul.mubr.bf16.gmra.mrb[0].mxu0 %v272
  %v538 = vpop.f32.mrb[0].mxu0
  %v539 = vadd.f32 0.0, %v538
  %v540 = vpop.f32.mrb[0].mxu0
  %v541 = vpop.f32.mrb[0].mxu0
  %v542 = vadd.f32 0.0, %v541
  %v543 = vpop.f32.mrb[0].mxu0
  %544 = vmatprep.mubr.bf16.mxu0 %v275
  %545 = vmatmul.mubr.bf16.gmra.mrb[0].mxu0 %v274
  %v546 = vpop.f32.mrb[0].mxu0
  %v547 = vadd.f32 0.0, %v546
  %v548 = vpop.f32.mrb[0].mxu0
  %v549 = vpop.f32.mrb[0].mxu0
  %v550 = vadd.f32 0.0, %v549
  %v551 = vpop.f32.mrb[0].mxu0
  %552 = vmatprep.mubr.bf16.mxu0 %v277
  %553 = vmatmul.mubr.bf16.gmra.mrb[0].mxu0 %v276
  %v554 = vpop.f32.mrb[0].mxu0
  %v555 = vadd.f32 0.0, %v554
  %v556 = vpop.f32.mrb[0].mxu0
  %v557 = vpop.f32.mrb[0].mxu0
  %v558 = vadd.f32 0.0, %v557
  %v559 = vpop.f32.mrb[0].mxu0
  %560 = vmatprep.mubr.bf16.mxu0 %v279
  %561 = vmatmul.mubr.bf16.gmra.mrb[0].mxu0 %v278
  %v562 = vpop.f32.mrb[0].mxu0
  %v563 = vadd.f32 0.0, %v562
  %v564 = vpop.f32.mrb[0].mxu0
  %v565 = vpop.f32.mrb[0].mxu0
  %v566 = vadd.f32 0.0, %v565
  %v567 = vpop.f32.mrb[0].mxu0
  %568 = vdwg.mxu0
  %v569 = vadd.f32 %v52, %v443
  %v570 = vadd.f32 %v53, %v446
  %v571 = vadd.f32 %v54, %v451
  %v572 = vadd.f32 %v55, %v454
  %v573 = vadd.f32 %v56, %v459
  %v574 = vadd.f32 %v57, %v462
  %v575 = vadd.f32 %v58, %v467
  %v576 = vadd.f32 %v59, %v470
  %v577 = vadd.f32 %v60, %v475
  %v578 = vadd.f32 %v61, %v478
  %v579 = vadd.f32 %v62, %v483
  %v580 = vadd.f32 %v63, %v486
  %v581 = vadd.f32 %v64, %v491
  %v582 = vadd.f32 %v65, %v494
  %v583 = vadd.f32 %v66, %v499
  %v584 = vadd.f32 %v67, %v502
  %v585 = vadd.f32 %v68, %v507
  %v586 = vadd.f32 %v69, %v510
  %v587 = vadd.f32 %v70, %v515
  %v588 = vadd.f32 %v71, %v518
  %v589 = vadd.f32 %v72, %v523
  %v590 = vadd.f32 %v73, %v526
  %v591 = vadd.f32 %v74, %v531
  %v592 = vadd.f32 %v75, %v534
  %v593 = vadd.f32 %v76, %v539
  %v594 = vadd.f32 %v77, %v542
  %v595 = vadd.f32 %v78, %v547
  %v596 = vadd.f32 %v79, %v550
  %v597 = vadd.f32 %v80, %v555
  %v598 = vadd.f32 %v81, %v558
  %v599 = vadd.f32 %v82, %v563
  %v600 = vadd.f32 %v83, %v566
  %601 = vst [vmem:[#allocation2] sm:$0xff] %v569
  %602 = vst [vmem:[#allocation2 + $0x8] sm:$0xff] %v570
  %603 = vst [vmem:[#allocation2 + $0x10] sm:$0xff] %v571
  %604 = vst [vmem:[#allocation2 + $0x18] sm:$0xff] %v572
  %605 = vst [vmem:[#allocation2 + $0x20] sm:$0xff] %v573
  %606 = vst [vmem:[#allocation2 + $0x28] sm:$0xff] %v574
  %607 = vst [vmem:[#allocation2 + $0x30] sm:$0xff] %v575
  %608 = vst [vmem:[#allocation2 + $0x38] sm:$0xff] %v576
  %609 = vst [vmem:[#allocation2 + $0x40] sm:$0xff] %v577
  %610 = vst [vmem:[#allocation2 + $0x48] sm:$0xff] %v578
  %611 = vst [vmem:[#allocation2 + $0x50] sm:$0xff] %v579
  %612 = vst [vmem:[#allocation2 + $0x58] sm:$0xff] %v580
  %613 = vst [vmem:[#allocation2 + $0x60] sm:$0xff] %v581
  %614 = vst [vmem:[#allocation2 + $0x68] sm:$0xff] %v582
  %615 = vst [vmem:[#allocation2 + $0x70] sm:$0xff] %v583
  %616 = vst [vmem:[#allocation2 + $0x78] sm:$0xff] %v584
  %617 = vst [vmem:[#allocation2 + $0x80] sm:$0xff] %v585
  %618 = vst [vmem:[#allocation2 + $0x88] sm:$0xff] %v586
  %619 = vst [vmem:[#allocation2 + $0x90] sm:$0xff] %v587
  %620 = vst [vmem:[#allocation2 + $0x98] sm:$0xff] %v588
  %621 = vst [vmem:[#allocation2 + $0xa0] sm:$0xff] %v589
  %622 = vst [vmem:[#allocation2 + $0xa8] sm:$0xff] %v590
  %623 = vst [vmem:[#allocation2 + $0xb0] sm:$0xff] %v591
  %624 = vst [vmem:[#allocation2 + $0xb8] sm:$0xff] %v592
  %625 = vst [vmem:[#allocation2 + $0xc0] sm:$0xff] %v593
  %626 = vst [vmem:[#allocation2 + $0xc8] sm:$0xff] %v594
  %627 = vst [vmem:[#allocation2 + $0xd0] sm:$0xff] %v595
  %628 = vst [vmem:[#allocation2 + $0xd8] sm:$0xff] %v596
  %629 = vst [vmem:[#allocation2 + $0xe0] sm:$0xff] %v597
  %630 = vst [vmem:[#allocation2 + $0xe8] sm:$0xff] %v598
  %631 = vst [vmem:[#allocation2 + $0xf0] sm:$0xff] %v599
  %632 = vst [vmem:[#allocation2 + $0xf8] sm:$0xff] %v600
  // Predicated region
  $region18: #{gcn_forward.3} parent=0 // pred_check
    %p633 = pneg %p15
  $region19: #{gcn_forward.3} parent=0 // pred_check_branch
    %635 = sbr.rel (%p633) target = $region21
  $region20: #{gcn_forward.3} parent=0 // pred_region
    %v636 = vld [vmem:[#allocation2] sm:$0xff]
    %v637 = vld [vmem:[#allocation2 + $0x8] sm:$0xff]
    %v638 = vld [vmem:[#allocation2 + $0x10] sm:$0xff]
    %v639 = vld [vmem:[#allocation2 + $0x18] sm:$0xff]
    %v640 = vld [vmem:[#allocation2 + $0x20] sm:$0xff]
    %v641 = vld [vmem:[#allocation2 + $0x28] sm:$0xff]
    %v642 = vld [vmem:[#allocation2 + $0x30] sm:$0xff]
    %v643 = vld [vmem:[#allocation2 + $0x38] sm:$0xff]
    %v644 = vld [vmem:[#allocation2 + $0x40] sm:$0xff]
    %v645 = vld [vmem:[#allocation2 + $0x48] sm:$0xff]
    %v646 = vld [vmem:[#allocation2 + $0x50] sm:$0xff]
    %v647 = vld [vmem:[#allocation2 + $0x58] sm:$0xff]
    %v648 = vld [vmem:[#allocation2 + $0x60] sm:$0xff]
    %v649 = vld [vmem:[#allocation2 + $0x68] sm:$0xff]
    %v650 = vld [vmem:[#allocation2 + $0x70] sm:$0xff]
    %v651 = vld [vmem:[#allocation2 + $0x78] sm:$0xff]
    %v652 = vld [vmem:[#allocation2 + $0x80] sm:$0xff]
    %v653 = vld [vmem:[#allocation2 + $0x88] sm:$0xff]
    %v654 = vld [vmem:[#allocation2 + $0x90] sm:$0xff]
    %v655 = vld [vmem:[#allocation2 + $0x98] sm:$0xff]
    %v656 = vld [vmem:[#allocation2 + $0xa0] sm:$0xff]
    %v657 = vld [vmem:[#allocation2 + $0xa8] sm:$0xff]
    %v658 = vld [vmem:[#allocation2 + $0xb0] sm:$0xff]
    %v659 = vld [vmem:[#allocation2 + $0xb8] sm:$0xff]
    %v660 = vld [vmem:[#allocation2 + $0xc0] sm:$0xff]
    %v661 = vld [vmem:[#allocation2 + $0xc8] sm:$0xff]
    %v662 = vld [vmem:[#allocation2 + $0xd0] sm:$0xff]
    %v663 = vld [vmem:[#allocation2 + $0xd8] sm:$0xff]
    %v664 = vld [vmem:[#allocation2 + $0xe0] sm:$0xff]
    %v665 = vld [vmem:[#allocation2 + $0xe8] sm:$0xff]
    %v666 = vld [vmem:[#allocation2 + $0xf0] sm:$0xff]
    %v667 = vld [vmem:[#allocation2 + $0xf8] sm:$0xff]
    %v668 = vld [vmem:[%s2] sm:$0x1]
    %v670 = vlaneseq
    %v671 = vshrl.u32 %v670, 7
    %v672 = vsub.s32 0, %v671
    %v673 = vrot.slane %v668, %v672
    %v675 = vadd.f32 %v636, %v673
    %v676 = vadd.f32 %v637, %v673
    %v677 = vadd.f32 %v638, %v673
    %v678 = vadd.f32 %v639, %v673
    %v679 = vadd.f32 %v640, %v673
    %v680 = vadd.f32 %v641, %v673
    %v681 = vadd.f32 %v642, %v673
    %v682 = vadd.f32 %v643, %v673
    %v683 = vadd.f32 %v644, %v673
    %v684 = vadd.f32 %v645, %v673
    %v685 = vadd.f32 %v646, %v673
    %v686 = vadd.f32 %v647, %v673
    %v687 = vadd.f32 %v648, %v673
    %v688 = vadd.f32 %v649, %v673
    %v689 = vadd.f32 %v650, %v673
    %v690 = vadd.f32 %v651, %v673
    %v691 = vadd.f32 %v652, %v673
    %v692 = vadd.f32 %v653, %v673
    %v693 = vadd.f32 %v654, %v673
    %v694 = vadd.f32 %v655, %v673
    %v695 = vadd.f32 %v656, %v673
    %v696 = vadd.f32 %v657, %v673
    %v697 = vadd.f32 %v658, %v673
    %v698 = vadd.f32 %v659, %v673
    %v699 = vadd.f32 %v660, %v673
    %v700 = vadd.f32 %v661, %v673
    %v701 = vadd.f32 %v662, %v673
    %v702 = vadd.f32 %v663, %v673
    %v703 = vadd.f32 %v664, %v673
    %v704 = vadd.f32 %v665, %v673
    %v705 = vadd.f32 %v666, %v673
    %v706 = vadd.f32 %v667, %v673
    %707 = vst [vmem:[%s3] sm:$0xff] %v675
    %708 = vst [vmem:[%s3 + $0x8] sm:$0xff] %v676
    %709 = vst [vmem:[%s3 + $0x10] sm:$0xff] %v677
    %710 = vst [vmem:[%s3 + $0x18] sm:$0xff] %v678
    %711 = vst [vmem:[%s3 + $0x20] sm:$0xff] %v679
    %712 = vst [vmem:[%s3 + $0x28] sm:$0xff] %v680
    %713 = vst [vmem:[%s3 + $0x30] sm:$0xff] %v681
    %714 = vst [vmem:[%s3 + $0x38] sm:$0xff] %v682
    %715 = vst [vmem:[%s3 + $0x40] sm:$0xff] %v683
    %716 = vst [vmem:[%s3 + $0x48] sm:$0xff] %v684
    %717 = vst [vmem:[%s3 + $0x50] sm:$0xff] %v685
    %718 = vst [vmem:[%s3 + $0x58] sm:$0xff] %v686
    %719 = vst [vmem:[%s3 + $0x60] sm:$0xff] %v687
    %720 = vst [vmem:[%s3 + $0x68] sm:$0xff] %v688
    %721 = vst [vmem:[%s3 + $0x70] sm:$0xff] %v689
    %722 = vst [vmem:[%s3 + $0x78] sm:$0xff] %v690
    %723 = vst [vmem:[%s3 + $0x80] sm:$0xff] %v691
    %724 = vst [vmem:[%s3 + $0x88] sm:$0xff] %v692
    %725 = vst [vmem:[%s3 + $0x90] sm:$0xff] %v693
    %726 = vst [vmem:[%s3 + $0x98] sm:$0xff] %v694
    %727 = vst [vmem:[%s3 + $0xa0] sm:$0xff] %v695
    %728 = vst [vmem:[%s3 + $0xa8] sm:$0xff] %v696
    %729 = vst [vmem:[%s3 + $0xb0] sm:$0xff] %v697
    %730 = vst [vmem:[%s3 + $0xb8] sm:$0xff] %v698
    %731 = vst [vmem:[%s3 + $0xc0] sm:$0xff] %v699
    %732 = vst [vmem:[%s3 + $0xc8] sm:$0xff] %v700
    %733 = vst [vmem:[%s3 + $0xd0] sm:$0xff] %v701
    %734 = vst [vmem:[%s3 + $0xd8] sm:$0xff] %v702
    %735 = vst [vmem:[%s3 + $0xe0] sm:$0xff] %v703
    %736 = vst [vmem:[%s3 + $0xe8] sm:$0xff] %v704
    %737 = vst [vmem:[%s3 + $0xf0] sm:$0xff] %v705
    %738 = vst [vmem:[%s3 + $0xf8] sm:$0xff] %v706
  $region21: #{gcn_forward.3} parent=0 // pred_fallthru
    _
  // Predicated region
  $region22: #{gcn_forward.3} parent=0 // pred_check
    _
  $region23: #{gcn_forward.3} parent=0 // pred_check_branch
    %740 = sbr.rel (0) target = $region25
  $region24: #{gcn_forward.3} parent=0 // pred_region
    _
  $region25: #{gcn_forward.3} parent=0 // pred_fallthru
    _
  // Predicated region
  $region26: #{gcn_forward.3} parent=0 // pred_check
    _
  $region27: #{gcn_forward.3} parent=0 // pred_check_branch
    %742 = sbr.rel (0) target = $region29
  $region28: #{gcn_forward.3} parent=0 // pred_region
    _
  $region29: #{gcn_forward.3} parent=0 // pred_fallthru
    _

// kernel: gcn_forward.2
$region0: #{gcn_forward.2}
  #allocation0 [shape = 'u32[]', space=smem, size = 0x4, offset = 0x4, fixed_abs, tag = 'smem constant byte address 0x4 - core index']
  #allocation1 [shape = 'u32[144,128]{1,0:T(1,128)}', space=vmem, size = 0x12000, scoped, tag = 'internal scratch']
  #allocation2 [shape = 'f32[256,128]{1,0:T(8,128)}', space=vmem, size = 0x20000, scoped, tag = 'scratch operand']
  %s0 = inlined_call_operand.vmem [shape: bf16[256,256], index: 0, kind: input, shape index: {}]
  %s1 = inlined_call_operand.vmem [shape: bf16[256,128], index: 1, kind: input, shape index: {}]
  %s2 = inlined_call_operand.vmem [shape: f32[1,128], index: 2, kind: input, shape index: {}]
  %s3 = inlined_call_operand.vmem [shape: bf16[128,128], index: 3, kind: input, shape index: {}]
  %s4 = inlined_call_operand.vmem [shape: bf16[256,128], index: 4, kind: output, shape index: {}]
  %s5 = sld [smem:[#allocation0]]
  $region34: #{gcn_forward.2} parent=0
    _
  %s7 = ssub.s32 1, %s5
  %s8 = scalar_select 0, %s7, %s5
  // Predicated region
  $region2: #{gcn_forward.2} parent=0 // pred_check
    _
  $region3: #{gcn_forward.2} parent=0 // pred_check_branch
    %10 = sbr.rel (0) target = $region5
  $region4: #{gcn_forward.2} parent=0 // pred_region
    _
  $region5: #{gcn_forward.2} parent=0 // pred_fallthru
    _
  // Predicated region
  $region6: #{gcn_forward.2} parent=0 // pred_check
    _
  $region7: #{gcn_forward.2} parent=0 // pred_check_branch
    %12 = sbr.rel (0) target = $region9
  $region8: #{gcn_forward.2} parent=0 // pred_region
    _
  $region9: #{gcn_forward.2} parent=0 // pred_fallthru
    _
  // Predicated region
  $region10: #{gcn_forward.2} parent=0 // pred_check
    _
  $region11: #{gcn_forward.2} parent=0 // pred_check_branch
    %14 = sbr.rel (0) target = $region13
  $region12: #{gcn_forward.2} parent=0 // pred_region
    _
  $region13: #{gcn_forward.2} parent=0 // pred_fallthru
    _
  // Predicated region
  $region14: #{gcn_forward.2} parent=0 // pred_check
    _
  $region15: #{gcn_forward.2} parent=0 // pred_check_branch
    %16 = sbr.rel (0) target = $region17
  $region16: #{gcn_forward.2} parent=0 // pred_region
    _
  $region17: #{gcn_forward.2} parent=0 // pred_fallthru
    _
  %p18 = scmp.eq.s32.totalorder 0, 0
  // Predicated region
  $region18: #{gcn_forward.2} parent=0 // pred_check
    %p19 = pneg %p18
  $region19: #{gcn_forward.2} parent=0 // pred_check_branch
    %21 = sbr.rel (%p19) target = $region21
  $region20: #{gcn_forward.2} parent=0 // pred_region
    %22 = vst [vmem:[#allocation2] sm:$0xff] 0.0
    %23 = vst [vmem:[#allocation2 + $0x8] sm:$0xff] 0.0
    %24 = vst [vmem:[#allocation2 + $0x10] sm:$0xff] 0.0
    %25 = vst [vmem:[#allocation2 + $0x18] sm:$0xff] 0.0
    %26 = vst [vmem:[#allocation2 + $0x20] sm:$0xff] 0.0
    %27 = vst [vmem:[#allocation2 + $0x28] sm:$0xff] 0.0
    %28 = vst [vmem:[#allocation2 + $0x30] sm:$0xff] 0.0
    %29 = vst [vmem:[#allocation2 + $0x38] sm:$0xff] 0.0
    %30 = vst [vmem:[#allocation2 + $0x40] sm:$0xff] 0.0
    %31 = vst [vmem:[#allocation2 + $0x48] sm:$0xff] 0.0
    %32 = vst [vmem:[#allocation2 + $0x50] sm:$0xff] 0.0
    %33 = vst [vmem:[#allocation2 + $0x58] sm:$0xff] 0.0
    %34 = vst [vmem:[#allocation2 + $0x60] sm:$0xff] 0.0
    %35 = vst [vmem:[#allocation2 + $0x68] sm:$0xff] 0.0
    %36 = vst [vmem:[#allocation2 + $0x70] sm:$0xff] 0.0
    %37 = vst [vmem:[#allocation2 + $0x78] sm:$0xff] 0.0
    %38 = vst [vmem:[#allocation2 + $0x80] sm:$0xff] 0.0
    %39 = vst [vmem:[#allocation2 + $0x88] sm:$0xff] 0.0
    %40 = vst [vmem:[#allocation2 + $0x90] sm:$0xff] 0.0
    %41 = vst [vmem:[#allocation2 + $0x98] sm:$0xff] 0.0
    %42 = vst [vmem:[#allocation2 + $0xa0] sm:$0xff] 0.0
    %43 = vst [vmem:[#allocation2 + $0xa8] sm:$0xff] 0.0
    %44 = vst [vmem:[#allocation2 + $0xb0] sm:$0xff] 0.0
    %45 = vst [vmem:[#allocation2 + $0xb8] sm:$0xff] 0.0
    %46 = vst [vmem:[#allocation2 + $0xc0] sm:$0xff] 0.0
    %47 = vst [vmem:[#allocation2 + $0xc8] sm:$0xff] 0.0
    %48 = vst [vmem:[#allocation2 + $0xd0] sm:$0xff] 0.0
    %49 = vst [vmem:[#allocation2 + $0xd8] sm:$0xff] 0.0
    %50 = vst [vmem:[#allocation2 + $0xe0] sm:$0xff] 0.0
    %51 = vst [vmem:[#allocation2 + $0xe8] sm:$0xff] 0.0
    %52 = vst [vmem:[#allocation2 + $0xf0] sm:$0xff] 0.0
    %53 = vst [vmem:[#allocation2 + $0xf8] sm:$0xff] 0.0
  $region21: #{gcn_forward.2} parent=0 // pred_fallthru
    _
  %s54 = smul.u32 0, 256
  %v55 = vld [vmem:[#allocation2] sm:$0xff]
  %v56 = vld [vmem:[#allocation2 + $0x8] sm:$0xff]
  %v57 = vld [vmem:[#allocation2 + $0x10] sm:$0xff]
  %v58 = vld [vmem:[#allocation2 + $0x18] sm:$0xff]
  %v59 = vld [vmem:[#allocation2 + $0x20] sm:$0xff]
  %v60 = vld [vmem:[#allocation2 + $0x28] sm:$0xff]
  %v61 = vld [vmem:[#allocation2 + $0x30] sm:$0xff]
  %v62 = vld [vmem:[#allocation2 + $0x38] sm:$0xff]
  %v63 = vld [vmem:[#allocation2 + $0x40] sm:$0xff]
  %v64 = vld [vmem:[#allocation2 + $0x48] sm:$0xff]
  %v65 = vld [vmem:[#allocation2 + $0x50] sm:$0xff]
  %v66 = vld [vmem:[#allocation2 + $0x58] sm:$0xff]
  %v67 = vld [vmem:[#allocation2 + $0x60] sm:$0xff]
  %v68 = vld [vmem:[#allocation2 + $0x68] sm:$0xff]
  %v69 = vld [vmem:[#allocation2 + $0x70] sm:$0xff]
  %v70 = vld [vmem:[#allocation2 + $0x78] sm:$0xff]
  %v71 = vld [vmem:[#allocation2 + $0x80] sm:$0xff]
  %v72 = vld [vmem:[#allocation2 + $0x88] sm:$0xff]
  %v73 = vld [vmem:[#allocation2 + $0x90] sm:$0xff]
  %v74 = vld [vmem:[#allocation2 + $0x98] sm:$0xff]
  %v75 = vld [vmem:[#allocation2 + $0xa0] sm:$0xff]
  %v76 = vld [vmem:[#allocation2 + $0xa8] sm:$0xff]
  %v77 = vld [vmem:[#allocation2 + $0xb0] sm:$0xff]
  %v78 = vld [vmem:[#allocation2 + $0xb8] sm:$0xff]
  %v79 = vld [vmem:[#allocation2 + $0xc0] sm:$0xff]
  %v80 = vld [vmem:[#allocation2 + $0xc8] sm:$0xff]
  %v81 = vld [vmem:[#allocation2 + $0xd0] sm:$0xff]
  %v82 = vld [vmem:[#allocation2 + $0xd8] sm:$0xff]
  %v83 = vld [vmem:[#allocation2 + $0xe0] sm:$0xff]
  %v84 = vld [vmem:[#allocation2 + $0xe8] sm:$0xff]
  %v85 = vld [vmem:[#allocation2 + $0xf0] sm:$0xff]
  %v86 = vld [vmem:[#allocation2 + $0xf8] sm:$0xff]
  %v87 = vld [vmem:[%s0] sm:$0xff]
  %v88 = vld [vmem:[%s0 + $0x8] sm:$0xff]
  %v89 = vld [vmem:[%s0 + $0x10] sm:$0xff]
  %v90 = vld [vmem:[%s0 + $0x18] sm:$0xff]
  %v91 = vld [vmem:[%s0 + $0x20] sm:$0xff]
  %v92 = vld [vmem:[%s0 + $0x28] sm:$0xff]
  %v93 = vld [vmem:[%s0 + $0x30] sm:$0xff]
  %v94 = vld [vmem:[%s0 + $0x38] sm:$0xff]
  %v95 = vld [vmem:[%s0 + $0x40] sm:$0xff]
  %v96 = vld [vmem:[%s0 + $0x48] sm:$0xff]
  %v97 = vld [vmem:[%s0 + $0x50] sm:$0xff]
  %v98 = vld [vmem:[%s0 + $0x58] sm:$0xff]
  %v99 = vld [vmem:[%s0 + $0x60] sm:$0xff]
  %v100 = vld [vmem:[%s0 + $0x68] sm:$0xff]
  %v101 = vld [vmem:[%s0 + $0x70] sm:$0xff]
  %v102 = vld [vmem:[%s0 + $0x78] sm:$0xff]
  %v103 = vld [vmem:[%s0 + $0x80] sm:$0xff]
  %v104 = vld [vmem:[%s0 + $0x88] sm:$0xff]
  %v105 = vld [vmem:[%s0 + $0x90] sm:$0xff]
  %v106 = vld [vmem:[%s0 + $0x98] sm:$0xff]
  %v107 = vld [vmem:[%s0 + $0xa0] sm:$0xff]
  %v108 = vld [vmem:[%s0 + $0xa8] sm:$0xff]
  %v109 = vld [vmem:[%s0 + $0xb0] sm:$0xff]
  %v110 = vld [vmem:[%s0 + $0xb8] sm:$0xff]
  %v111 = vld [vmem:[%s0 + $0xc0] sm:$0xff]
  %v112 = vld [vmem:[%s0 + $0xc8] sm:$0xff]
  %v113 = vld [vmem:[%s0 + $0xd0] sm:$0xff]
  %v114 = vld [vmem:[%s0 + $0xd8] sm:$0xff]
  %v115 = vld [vmem:[%s0 + $0xe0] sm:$0xff]
  %v116 = vld [vmem:[%s0 + $0xe8] sm:$0xff]
  %v117 = vld [vmem:[%s0 + $0xf0] sm:$0xff]
  %v118 = vld [vmem:[%s0 + $0xf8] sm:$0xff]
  %s119 = sshra.s32 %s54, 3
  %s120 = sand.u32 %s54, 7
  %s121 = smul.addr %s119, 4
  %s122 = scalar_lea.vmem %s1, %s121
  %v123 = vld [vmem:[%s122] sm:$0xf]
  %v124 = vld [vmem:[%s122 + $0x4] sm:$0xf]
  %v125 = vld [vmem:[%s122 + $0x8] sm:$0xf]
  %v126 = vld [vmem:[%s122 + $0xc] sm:$0xf]
  %v127 = vld [vmem:[%s122 + $0x10] sm:$0xf]
  %v128 = vld [vmem:[%s122 + $0x14] sm:$0xf]
  %v129 = vld [vmem:[%s122 + $0x18] sm:$0xf]
  %v130 = vld [vmem:[%s122 + $0x1c] sm:$0xf]
  %v131 = vld [vmem:[%s122 + $0x20] sm:$0xf]
  %v132 = vld [vmem:[%s122 + $0x24] sm:$0xf]
  %v133 = vld [vmem:[%s122 + $0x28] sm:$0xf]
  %v134 = vld [vmem:[%s122 + $0x2c] sm:$0xf]
  %v135 = vld [vmem:[%s122 + $0x30] sm:$0xf]
  %v136 = vld [vmem:[%s122 + $0x34] sm:$0xf]
  %v137 = vld [vmem:[%s122 + $0x38] sm:$0xf]
  %v138 = vld [vmem:[%s122 + $0x3c] sm:$0xf]
  %v139 = vld [vmem:[%s122 + $0x40] sm:$0xf]
  %v140 = vld [vmem:[%s122 + $0x44] sm:$0xf]
  %v141 = vld [vmem:[%s122 + $0x48] sm:$0xf]
  %v142 = vld [vmem:[%s122 + $0x4c] sm:$0xf]
  %v143 = vld [vmem:[%s122 + $0x50] sm:$0xf]
  %v144 = vld [vmem:[%s122 + $0x54] sm:$0xf]
  %v145 = vld [vmem:[%s122 + $0x58] sm:$0xf]
  %v146 = vld [vmem:[%s122 + $0x5c] sm:$0xf]
  %v147 = vld [vmem:[%s122 + $0x60] sm:$0xf]
  %v148 = vld [vmem:[%s122 + $0x64] sm:$0xf]
  %v149 = vld [vmem:[%s122 + $0x68] sm:$0xf]
  %v150 = vld [vmem:[%s122 + $0x6c] sm:$0xf]
  %v151 = vld [vmem:[%s122 + $0x70] sm:$0xf]
  %v152 = vld [vmem:[%s122 + $0x74] sm:$0xf]
  %v153 = vld [vmem:[%s122 + $0x78] sm:$0xf]
  %v154 = vld [vmem:[%s122 + $0x7c] sm:$0xf]
  %v187 = vunpack.c.l.b16 %v87
  %v188 = vunpack.c.h.b16 %v87
  %v189 = vunpack.c.l.b16 %v88
  %v190 = vunpack.c.h.b16 %v88
  %v191 = vunpack.c.l.b16 %v89
  %v192 = vunpack.c.h.b16 %v89
  %v193 = vunpack.c.l.b16 %v90
  %v194 = vunpack.c.h.b16 %v90
  %v195 = vunpack.c.l.b16 %v91
  %v196 = vunpack.c.h.b16 %v91
  %v197 = vunpack.c.l.b16 %v92
  %v198 = vunpack.c.h.b16 %v92
  %v199 = vunpack.c.l.b16 %v93
  %v200 = vunpack.c.h.b16 %v93
  %v201 = vunpack.c.l.b16 %v94
  %v202 = vunpack.c.h.b16 %v94
  %v203 = vunpack.c.l.b16 %v95
  %v204 = vunpack.c.h.b16 %v95
  %v205 = vunpack.c.l.b16 %v96
  %v206 = vunpack.c.h.b16 %v96
  %v207 = vunpack.c.l.b16 %v97
  %v208 = vunpack.c.h.b16 %v97
  %v209 = vunpack.c.l.b16 %v98
  %v210 = vunpack.c.h.b16 %v98
  %v211 = vunpack.c.l.b16 %v99
  %v212 = vunpack.c.h.b16 %v99
  %v213 = vunpack.c.l.b16 %v100
  %v214 = vunpack.c.h.b16 %v100
  %v215 = vunpack.c.l.b16 %v101
  %v216 = vunpack.c.h.b16 %v101
  %v217 = vunpack.c.l.b16 %v102
  %v218 = vunpack.c.h.b16 %v102
  %v219 = vunpack.c.l.b16 %v103
  %v220 = vunpack.c.h.b16 %v103
  %v221 = vunpack.c.l.b16 %v104
  %v222 = vunpack.c.h.b16 %v104
  %v223 = vunpack.c.l.b16 %v105
  %v224 = vunpack.c.h.b16 %v105
  %v225 = vunpack.c.l.b16 %v106
  %v226 = vunpack.c.h.b16 %v106
  %v227 = vunpack.c.l.b16 %v107
  %v228 = vunpack.c.h.b16 %v107
  %v229 = vunpack.c.l.b16 %v108
  %v230 = vunpack.c.h.b16 %v108
  %v231 = vunpack.c.l.b16 %v109
  %v232 = vunpack.c.h.b16 %v109
  %v233 = vunpack.c.l.b16 %v110
  %v234 = vunpack.c.h.b16 %v110
  %v235 = vunpack.c.l.b16 %v111
  %v236 = vunpack.c.h.b16 %v111
  %v237 = vunpack.c.l.b16 %v112
  %v238 = vunpack.c.h.b16 %v112
  %v239 = vunpack.c.l.b16 %v113
  %v240 = vunpack.c.h.b16 %v113
  %v241 = vunpack.c.l.b16 %v114
  %v242 = vunpack.c.h.b16 %v114
  %v243 = vunpack.c.l.b16 %v115
  %v244 = vunpack.c.h.b16 %v115
  %v245 = vunpack.c.l.b16 %v116
  %v246 = vunpack.c.h.b16 %v116
  %v247 = vunpack.c.l.b16 %v117
  %v248 = vunpack.c.h.b16 %v117
  %v249 = vunpack.c.l.b16 %v118
  %v250 = vunpack.c.h.b16 %v118
  %v251 = vpack.c.b16 %v189, %v187
  %v252 = vpack.c.b16 %v190, %v188
  %v253 = vpack.c.b16 %v193, %v191
  %v254 = vpack.c.b16 %v194, %v192
  %v255 = vpack.c.b16 %v197, %v195
  %v256 = vpack.c.b16 %v198, %v196
  %v257 = vpack.c.b16 %v201, %v199
  %v258 = vpack.c.b16 %v202, %v200
  %v259 = vpack.c.b16 %v205, %v203
  %v260 = vpack.c.b16 %v206, %v204
  %v261 = vpack.c.b16 %v209, %v207
  %v262 = vpack.c.b16 %v210, %v208
  %v263 = vpack.c.b16 %v213, %v211
  %v264 = vpack.c.b16 %v214, %v212
  %v265 = vpack.c.b16 %v217, %v215
  %v266 = vpack.c.b16 %v218, %v216
  %v267 = vpack.c.b16 %v221, %v219
  %v268 = vpack.c.b16 %v222, %v220
  %v269 = vpack.c.b16 %v225, %v223
  %v270 = vpack.c.b16 %v226, %v224
  %v271 = vpack.c.b16 %v229, %v227
  %v272 = vpack.c.b16 %v230, %v228
  %v273 = vpack.c.b16 %v233, %v231
  %v274 = vpack.c.b16 %v234, %v232
  %v275 = vpack.c.b16 %v237, %v235
  %v276 = vpack.c.b16 %v238, %v236
  %v277 = vpack.c.b16 %v241, %v239
  %v278 = vpack.c.b16 %v242, %v240
  %v279 = vpack.c.b16 %v245, %v243
  %v280 = vpack.c.b16 %v246, %v244
  %v281 = vpack.c.b16 %v249, %v247
  %v282 = vpack.c.b16 %v250, %v248
  %v347 = vunpack.c.l.b16 %v123
  %v348 = vunpack.c.l.b16 %v124
  %v349 = vunpack.c.l.b16 %v125
  %v350 = vunpack.c.l.b16 %v126
  %v351 = vunpack.c.l.b16 %v127
  %v352 = vunpack.c.l.b16 %v128
  %v353 = vunpack.c.l.b16 %v129
  %v354 = vunpack.c.l.b16 %v130
  %v355 = vunpack.c.l.b16 %v131
  %v356 = vunpack.c.l.b16 %v132
  %v357 = vunpack.c.l.b16 %v133
  %v358 = vunpack.c.l.b16 %v134
  %v359 = vunpack.c.l.b16 %v135
  %v360 = vunpack.c.l.b16 %v136
  %v361 = vunpack.c.l.b16 %v137
  %v362 = vunpack.c.l.b16 %v138
  %v363 = vunpack.c.l.b16 %v139
  %v364 = vunpack.c.l.b16 %v140
  %v365 = vunpack.c.l.b16 %v141
  %v366 = vunpack.c.l.b16 %v142
  %v367 = vunpack.c.l.b16 %v143
  %v368 = vunpack.c.l.b16 %v144
  %v369 = vunpack.c.l.b16 %v145
  %v370 = vunpack.c.l.b16 %v146
  %v371 = vunpack.c.l.b16 %v147
  %v372 = vunpack.c.l.b16 %v148
  %v373 = vunpack.c.l.b16 %v149
  %v374 = vunpack.c.l.b16 %v150
  %v375 = vunpack.c.l.b16 %v151
  %v376 = vunpack.c.l.b16 %v152
  %v377 = vunpack.c.l.b16 %v153
  %v378 = vunpack.c.l.b16 %v154
  %v379 = vpack.c.b16 %v348, %v347
  %v380 = vpack.c.b16 %v350, %v349
  %v381 = vpack.c.b16 %v352, %v351
  %v382 = vpack.c.b16 %v354, %v353
  %v383 = vpack.c.b16 %v356, %v355
  %v384 = vpack.c.b16 %v358, %v357
  %v385 = vpack.c.b16 %v360, %v359
  %v386 = vpack.c.b16 %v362, %v361
  %v387 = vpack.c.b16 %v364, %v363
  %v388 = vpack.c.b16 %v366, %v365
  %v389 = vpack.c.b16 %v368, %v367
  %v390 = vpack.c.b16 %v370, %v369
  %v391 = vpack.c.b16 %v372, %v371
  %v392 = vpack.c.b16 %v374, %v373
  %v393 = vpack.c.b16 %v376, %v375
  %v394 = vpack.c.b16 %v378, %v377
  %411 = vmatprep.subr.bf16.mxu0 0
  %412 = vmatpush1.bf16.msra.mxu0 %v379
  %413 = vmatprep.subr.bf16.mxu0 0
  %414 = vmatpush1.bf16.msra.mxu0 %v380
  %415 = vmatprep.subr.bf16.mxu0 0
  %416 = vmatpush1.bf16.msra.mxu0 %v381
  %417 = vmatprep.subr.bf16.mxu0 0
  %418 = vmatpush1.bf16.msra.mxu0 %v382
  %419 = vmatprep.subr.bf16.mxu0 0
  %420 = vmatpush1.bf16.msra.mxu0 %v383
  %421 = vmatprep.subr.bf16.mxu0 0
  %422 = vmatpush1.bf16.msra.mxu0 %v384
  %423 = vmatprep.subr.bf16.mxu0 0
  %424 = vmatpush1.bf16.msra.mxu0 %v385
  %425 = vmatprep.subr.bf16.mxu0 0
  %426 = vmatpush1.bf16.msra.mxu0 %v386
  %427 = vmatprep.subr.bf16.mxu0 0
  %428 = vmatpush1.bf16.msra.mxu0 %v387
  %429 = vmatprep.subr.bf16.mxu0 0
  %430 = vmatpush1.bf16.msra.mxu0 %v388
  %431 = vmatprep.subr.bf16.mxu0 0
  %432 = vmatpush1.bf16.msra.mxu0 %v389
  %433 = vmatprep.subr.bf16.mxu0 0
  %434 = vmatpush1.bf16.msra.mxu0 %v390
  %435 = vmatprep.subr.bf16.mxu0 0
  %436 = vmatpush1.bf16.msra.mxu0 %v391
  %437 = vmatprep.subr.bf16.mxu0 0
  %438 = vmatpush1.bf16.msra.mxu0 %v392
  %439 = vmatprep.subr.bf16.mxu0 0
  %440 = vmatpush1.bf16.msra.mxu0 %v393
  %441 = vmatprep.subr.bf16.mxu0 0
  %442 = vmatpush1.bf16.msra.mxu0 %v394
  %443 = vmatprep.mubr.bf16.mxu0 %v252
  %444 = vmatmul.mubr.bf16.gmra.mrb[0].mxu0 %v251
  %v445 = vpop.f32.mrb[0].mxu0
  %v446 = vadd.f32 0.0, %v445
  %v447 = vpop.f32.mrb[0].mxu0
  %v448 = vpop.f32.mrb[0].mxu0
  %v449 = vadd.f32 0.0, %v448
  %v450 = vpop.f32.mrb[0].mxu0
  %451 = vmatprep.mubr.bf16.mxu0 %v254
  %452 = vmatmul.mubr.bf16.gmra.mrb[0].mxu0 %v253
  %v453 = vpop.f32.mrb[0].mxu0
  %v454 = vadd.f32 0.0, %v453
  %v455 = vpop.f32.mrb[0].mxu0
  %v456 = vpop.f32.mrb[0].mxu0
  %v457 = vadd.f32 0.0, %v456
  %v458 = vpop.f32.mrb[0].mxu0
  %459 = vmatprep.mubr.bf16.mxu0 %v256
  %460 = vmatmul.mubr.bf16.gmra.mrb[0].mxu0 %v255
  %v461 = vpop.f32.mrb[0].mxu0
  %v462 = vadd.f32 0.0, %v461
  %v463 = vpop.f32.mrb[0].mxu0
  %v464 = vpop.f32.mrb[0].mxu0
  %v465 = vadd.f32 0.0, %v464
  %v466 = vpop.f32.mrb[0].mxu0
  %467 = vmatprep.mubr.bf16.mxu0 %v258
  %468 = vmatmul.mubr.bf16.gmra.mrb[0].mxu0 %v257
  %v469 = vpop.f32.mrb[0].mxu0
  %v470 = vadd.f32 0.0, %v469
  %v471 = vpop.f32.mrb[0].mxu0
  %v472 = vpop.f32.mrb[0].mxu0
  %v473 = vadd.f32 0.0, %v472
  %v474 = vpop.f32.mrb[0].mxu0
  %475 = vmatprep.mubr.bf16.mxu0 %v260
  %476 = vmatmul.mubr.bf16.gmra.mrb[0].mxu0 %v259
  %v477 = vpop.f32.mrb[0].mxu0
  %v478 = vadd.f32 0.0, %v477
  %v479 = vpop.f32.mrb[0].mxu0
  %v480 = vpop.f32.mrb[0].mxu0
  %v481 = vadd.f32 0.0, %v480
  %v482 = vpop.f32.mrb[0].mxu0
  %483 = vmatprep.mubr.bf16.mxu0 %v262
  %484 = vmatmul.mubr.bf16.gmra.mrb[0].mxu0 %v261
  %v485 = vpop.f32.mrb[0].mxu0
  %v486 = vadd.f32 0.0, %v485
  %v487 = vpop.f32.mrb[0].mxu0
  %v488 = vpop.f32.mrb[0].mxu0
  %v489 = vadd.f32 0.0, %v488
  %v490 = vpop.f32.mrb[0].mxu0
  %491 = vmatprep.mubr.bf16.mxu0 %v264
  %492 = vmatmul.mubr.bf16.gmra.mrb[0].mxu0 %v263
  %v493 = vpop.f32.mrb[0].mxu0
  %v494 = vadd.f32 0.0, %v493
  %v495 = vpop.f32.mrb[0].mxu0
  %v496 = vpop.f32.mrb[0].mxu0
  %v497 = vadd.f32 0.0, %v496
  %v498 = vpop.f32.mrb[0].mxu0
  %499 = vmatprep.mubr.bf16.mxu0 %v266
  %500 = vmatmul.mubr.bf16.gmra.mrb[0].mxu0 %v265
  %v501 = vpop.f32.mrb[0].mxu0
  %v502 = vadd.f32 0.0, %v501
  %v503 = vpop.f32.mrb[0].mxu0
  %v504 = vpop.f32.mrb[0].mxu0
  %v505 = vadd.f32 0.0, %v504
  %v506 = vpop.f32.mrb[0].mxu0
  %507 = vmatprep.mubr.bf16.mxu0 %v268
  %508 = vmatmul.mubr.bf16.gmra.mrb[0].mxu0 %v267
  %v509 = vpop.f32.mrb[0].mxu0
  %v510 = vadd.f32 0.0, %v509
  %v511 = vpop.f32.mrb[0].mxu0
  %v512 = vpop.f32.mrb[0].mxu0
  %v513 = vadd.f32 0.0, %v512
  %v514 = vpop.f32.mrb[0].mxu0
  %515 = vmatprep.mubr.bf16.mxu0 %v270
  %516 = vmatmul.mubr.bf16.gmra.mrb[0].mxu0 %v269
  %v517 = vpop.f32.mrb[0].mxu0
  %v518 = vadd.f32 0.0, %v517
  %v519 = vpop.f32.mrb[0].mxu0
  %v520 = vpop.f32.mrb[0].mxu0
  %v521 = vadd.f32 0.0, %v520
  %v522 = vpop.f32.mrb[0].mxu0
  %523 = vmatprep.mubr.bf16.mxu0 %v272
  %524 = vmatmul.mubr.bf16.gmra.mrb[0].mxu0 %v271
  %v525 = vpop.f32.mrb[0].mxu0
  %v526 = vadd.f32 0.0, %v525
  %v527 = vpop.f32.mrb[0].mxu0
  %v528 = vpop.f32.mrb[0].mxu0
  %v529 = vadd.f32 0.0, %v528
  %v530 = vpop.f32.mrb[0].mxu0
  %531 = vmatprep.mubr.bf16.mxu0 %v274
  %532 = vmatmul.mubr.bf16.gmra.mrb[0].mxu0 %v273
  %v533 = vpop.f32.mrb[0].mxu0
  %v534 = vadd.f32 0.0, %v533
  %v535 = vpop.f32.mrb[0].mxu0
  %v536 = vpop.f32.mrb[0].mxu0
  %v537 = vadd.f32 0.0, %v536
  %v538 = vpop.f32.mrb[0].mxu0
  %539 = vmatprep.mubr.bf16.mxu0 %v276
  %540 = vmatmul.mubr.bf16.gmra.mrb[0].mxu0 %v275
  %v541 = vpop.f32.mrb[0].mxu0
  %v542 = vadd.f32 0.0, %v541
  %v543 = vpop.f32.mrb[0].mxu0
  %v544 = vpop.f32.mrb[0].mxu0
  %v545 = vadd.f32 0.0, %v544
  %v546 = vpop.f32.mrb[0].mxu0
  %547 = vmatprep.mubr.bf16.mxu0 %v278
  %548 = vmatmul.mubr.bf16.gmra.mrb[0].mxu0 %v277
  %v549 = vpop.f32.mrb[0].mxu0
  %v550 = vadd.f32 0.0, %v549
  %v551 = vpop.f32.mrb[0].mxu0
  %v552 = vpop.f32.mrb[0].mxu0
  %v553 = vadd.f32 0.0, %v552
  %v554 = vpop.f32.mrb[0].mxu0
  %555 = vmatprep.mubr.bf16.mxu0 %v280
  %556 = vmatmul.mubr.bf16.gmra.mrb[0].mxu0 %v279
  %v557 = vpop.f32.mrb[0].mxu0
  %v558 = vadd.f32 0.0, %v557
  %v559 = vpop.f32.mrb[0].mxu0
  %v560 = vpop.f32.mrb[0].mxu0
  %v561 = vadd.f32 0.0, %v560
  %v562 = vpop.f32.mrb[0].mxu0
  %563 = vmatprep.mubr.bf16.mxu0 %v282
  %564 = vmatmul.mubr.bf16.gmra.mrb[0].mxu0 %v281
  %v565 = vpop.f32.mrb[0].mxu0
  %v566 = vadd.f32 0.0, %v565
  %v567 = vpop.f32.mrb[0].mxu0
  %v568 = vpop.f32.mrb[0].mxu0
  %v569 = vadd.f32 0.0, %v568
  %v570 = vpop.f32.mrb[0].mxu0
  %571 = vdwg.mxu0
  %v572 = vadd.f32 %v55, %v446
  %v573 = vadd.f32 %v56, %v449
  %v574 = vadd.f32 %v57, %v454
  %v575 = vadd.f32 %v58, %v457
  %v576 = vadd.f32 %v59, %v462
  %v577 = vadd.f32 %v60, %v465
  %v578 = vadd.f32 %v61, %v470
  %v579 = vadd.f32 %v62, %v473
  %v580 = vadd.f32 %v63, %v478
  %v581 = vadd.f32 %v64, %v481
  %v582 = vadd.f32 %v65, %v486
  %v583 = vadd.f32 %v66, %v489
  %v584 = vadd.f32 %v67, %v494
  %v585 = vadd.f32 %v68, %v497
  %v586 = vadd.f32 %v69, %v502
  %v587 = vadd.f32 %v70, %v505
  %v588 = vadd.f32 %v71, %v510
  %v589 = vadd.f32 %v72, %v513
  %v590 = vadd.f32 %v73, %v518
  %v591 = vadd.f32 %v74, %v521
  %v592 = vadd.f32 %v75, %v526
  %v593 = vadd.f32 %v76, %v529
  %v594 = vadd.f32 %v77, %v534
  %v595 = vadd.f32 %v78, %v537
  %v596 = vadd.f32 %v79, %v542
  %v597 = vadd.f32 %v80, %v545
  %v598 = vadd.f32 %v81, %v550
  %v599 = vadd.f32 %v82, %v553
  %v600 = vadd.f32 %v83, %v558
  %v601 = vadd.f32 %v84, %v561
  %v602 = vadd.f32 %v85, %v566
  %v603 = vadd.f32 %v86, %v569
  %604 = vst [vmem:[#allocation2] sm:$0xff] %v572
  %605 = vst [vmem:[#allocation2 + $0x8] sm:$0xff] %v573
  %606 = vst [vmem:[#allocation2 + $0x10] sm:$0xff] %v574
  %607 = vst [vmem:[#allocation2 + $0x18] sm:$0xff] %v575
  %608 = vst [vmem:[#allocation2 + $0x20] sm:$0xff] %v576
  %609 = vst [vmem:[#allocation2 + $0x28] sm:$0xff] %v577
  %610 = vst [vmem:[#allocation2 + $0x30] sm:$0xff] %v578
  %611 = vst [vmem:[#allocation2 + $0x38] sm:$0xff] %v579
  %612 = vst [vmem:[#allocation2 + $0x40] sm:$0xff] %v580
  %613 = vst [vmem:[#allocation2 + $0x48] sm:$0xff] %v581
  %614 = vst [vmem:[#allocation2 + $0x50] sm:$0xff] %v582
  %615 = vst [vmem:[#allocation2 + $0x58] sm:$0xff] %v583
  %616 = vst [vmem:[#allocation2 + $0x60] sm:$0xff] %v584
  %617 = vst [vmem:[#allocation2 + $0x68] sm:$0xff] %v585
  %618 = vst [vmem:[#allocation2 + $0x70] sm:$0xff] %v586
  %619 = vst [vmem:[#allocation2 + $0x78] sm:$0xff] %v587
  %620 = vst [vmem:[#allocation2 + $0x80] sm:$0xff] %v588
  %621 = vst [vmem:[#allocation2 + $0x88] sm:$0xff] %v589
  %622 = vst [vmem:[#allocation2 + $0x90] sm:$0xff] %v590
  %623 = vst [vmem:[#allocation2 + $0x98] sm:$0xff] %v591
  %624 = vst [vmem:[#allocation2 + $0xa0] sm:$0xff] %v592
  %625 = vst [vmem:[#allocation2 + $0xa8] sm:$0xff] %v593
  %626 = vst [vmem:[#allocation2 + $0xb0] sm:$0xff] %v594
  %627 = vst [vmem:[#allocation2 + $0xb8] sm:$0xff] %v595
  %628 = vst [vmem:[#allocation2 + $0xc0] sm:$0xff] %v596
  %629 = vst [vmem:[#allocation2 + $0xc8] sm:$0xff] %v597
  %630 = vst [vmem:[#allocation2 + $0xd0] sm:$0xff] %v598
  %631 = vst [vmem:[#allocation2 + $0xd8] sm:$0xff] %v599
  %632 = vst [vmem:[#allocation2 + $0xe0] sm:$0xff] %v600
  %633 = vst [vmem:[#allocation2 + $0xe8] sm:$0xff] %v601
  %634 = vst [vmem:[#allocation2 + $0xf0] sm:$0xff] %v602
  %635 = vst [vmem:[#allocation2 + $0xf8] sm:$0xff] %v603
  // Predicated region
  $region22: #{gcn_forward.2} parent=0 // pred_check
    %p636 = pneg %p18
  $region23: #{gcn_forward.2} parent=0 // pred_check_branch
    %638 = sbr.rel (%p636) target = $region25
  $region24: #{gcn_forward.2} parent=0 // pred_region
    %v639 = vld [vmem:[#allocation2] sm:$0xff]
    %v640 = vld [vmem:[#allocation2 + $0x8] sm:$0xff]
    %v641 = vld [vmem:[#allocation2 + $0x10] sm:$0xff]
    %v642 = vld [vmem:[#allocation2 + $0x18] sm:$0xff]
    %v643 = vld [vmem:[#allocation2 + $0x20] sm:$0xff]
    %v644 = vld [vmem:[#allocation2 + $0x28] sm:$0xff]
    %v645 = vld [vmem:[#allocation2 + $0x30] sm:$0xff]
    %v646 = vld [vmem:[#allocation2 + $0x38] sm:$0xff]
    %v647 = vld [vmem:[#allocation2 + $0x40] sm:$0xff]
    %v648 = vld [vmem:[#allocation2 + $0x48] sm:$0xff]
    %v649 = vld [vmem:[#allocation2 + $0x50] sm:$0xff]
    %v650 = vld [vmem:[#allocation2 + $0x58] sm:$0xff]
    %v651 = vld [vmem:[#allocation2 + $0x60] sm:$0xff]
    %v652 = vld [vmem:[#allocation2 + $0x68] sm:$0xff]
    %v653 = vld [vmem:[#allocation2 + $0x70] sm:$0xff]
    %v654 = vld [vmem:[#allocation2 + $0x78] sm:$0xff]
    %v655 = vld [vmem:[#allocation2 + $0x80] sm:$0xff]
    %v656 = vld [vmem:[#allocation2 + $0x88] sm:$0xff]
    %v657 = vld [vmem:[#allocation2 + $0x90] sm:$0xff]
    %v658 = vld [vmem:[#allocation2 + $0x98] sm:$0xff]
    %v659 = vld [vmem:[#allocation2 + $0xa0] sm:$0xff]
    %v660 = vld [vmem:[#allocation2 + $0xa8] sm:$0xff]
    %v661 = vld [vmem:[#allocation2 + $0xb0] sm:$0xff]
    %v662 = vld [vmem:[#allocation2 + $0xb8] sm:$0xff]
    %v663 = vld [vmem:[#allocation2 + $0xc0] sm:$0xff]
    %v664 = vld [vmem:[#allocation2 + $0xc8] sm:$0xff]
    %v665 = vld [vmem:[#allocation2 + $0xd0] sm:$0xff]
    %v666 = vld [vmem:[#allocation2 + $0xd8] sm:$0xff]
    %v667 = vld [vmem:[#allocation2 + $0xe0] sm:$0xff]
    %v668 = vld [vmem:[#allocation2 + $0xe8] sm:$0xff]
    %v669 = vld [vmem:[#allocation2 + $0xf0] sm:$0xff]
    %v670 = vld [vmem:[#allocation2 + $0xf8] sm:$0xff]
    %v671 = vld [vmem:[%s2] sm:$0x1]
    %v673 = vlaneseq
    %v674 = vshrl.u32 %v673, 7
    %v675 = vsub.s32 0, %v674
    %v676 = vrot.slane %v671, %v675
    %v678 = vadd.f32 %v639, %v676
    %v679 = vadd.f32 %v640, %v676
    %v680 = vadd.f32 %v641, %v676
    %v681 = vadd.f32 %v642, %v676
    %v682 = vadd.f32 %v643, %v676
    %v683 = vadd.f32 %v644, %v676
    %v684 = vadd.f32 %v645, %v676
    %v685 = vadd.f32 %v646, %v676
    %v686 = vadd.f32 %v647, %v676
    %v687 = vadd.f32 %v648, %v676
    %v688 = vadd.f32 %v649, %v676
    %v689 = vadd.f32 %v650, %v676
    %v690 = vadd.f32 %v651, %v676
    %v691 = vadd.f32 %v652, %v676
    %v692 = vadd.f32 %v653, %v676
    %v693 = vadd.f32 %v654, %v676
    %v694 = vadd.f32 %v655, %v676
    %v695 = vadd.f32 %v656, %v676
    %v696 = vadd.f32 %v657, %v676
    %v697 = vadd.f32 %v658, %v676
    %v698 = vadd.f32 %v659, %v676
    %v699 = vadd.f32 %v660, %v676
    %v700 = vadd.f32 %v661, %v676
    %v701 = vadd.f32 %v662, %v676
    %v702 = vadd.f32 %v663, %v676
    %v703 = vadd.f32 %v664, %v676
    %v704 = vadd.f32 %v665, %v676
    %v705 = vadd.f32 %v666, %v676
    %v706 = vadd.f32 %v667, %v676
    %v707 = vadd.f32 %v668, %v676
    %v708 = vadd.f32 %v669, %v676
    %v709 = vadd.f32 %v670, %v676
    %v710 = vmax.f32 %v678, 0.0
    %v711 = vmax.f32 %v679, 0.0
    %v712 = vmax.f32 %v680, 0.0
    %v713 = vmax.f32 %v681, 0.0
    %v714 = vmax.f32 %v682, 0.0
    %v715 = vmax.f32 %v683, 0.0
    %v716 = vmax.f32 %v684, 0.0
    %v717 = vmax.f32 %v685, 0.0
    %v718 = vmax.f32 %v686, 0.0
    %v719 = vmax.f32 %v687, 0.0
    %v720 = vmax.f32 %v688, 0.0
    %v721 = vmax.f32 %v689, 0.0
    %v722 = vmax.f32 %v690, 0.0
    %v723 = vmax.f32 %v691, 0.0
    %v724 = vmax.f32 %v692, 0.0
    %v725 = vmax.f32 %v693, 0.0
    %v726 = vmax.f32 %v694, 0.0
    %v727 = vmax.f32 %v695, 0.0
    %v728 = vmax.f32 %v696, 0.0
    %v729 = vmax.f32 %v697, 0.0
    %v730 = vmax.f32 %v698, 0.0
    %v731 = vmax.f32 %v699, 0.0
    %v732 = vmax.f32 %v700, 0.0
    %v733 = vmax.f32 %v701, 0.0
    %v734 = vmax.f32 %v702, 0.0
    %v735 = vmax.f32 %v703, 0.0
    %v736 = vmax.f32 %v704, 0.0
    %v737 = vmax.f32 %v705, 0.0
    %v738 = vmax.f32 %v706, 0.0
    %v739 = vmax.f32 %v707, 0.0
    %v740 = vmax.f32 %v708, 0.0
    %v741 = vmax.f32 %v709, 0.0
    %v742 = vpack.c.bf16 %v711, %v710
    %v743 = vpack.c.bf16 %v713, %v712
    %v744 = vpack.c.bf16 %v715, %v714
    %v745 = vpack.c.bf16 %v717, %v716
    %v746 = vpack.c.bf16 %v719, %v718
    %v747 = vpack.c.bf16 %v721, %v720
    %v748 = vpack.c.bf16 %v723, %v722
    %v749 = vpack.c.bf16 %v725, %v724
    %v750 = vpack.c.bf16 %v727, %v726
    %v751 = vpack.c.bf16 %v729, %v728
    %v752 = vpack.c.bf16 %v731, %v730
    %v753 = vpack.c.bf16 %v733, %v732
    %v754 = vpack.c.bf16 %v735, %v734
    %v755 = vpack.c.bf16 %v737, %v736
    %v756 = vpack.c.bf16 %v739, %v738
    %v757 = vpack.c.bf16 %v741, %v740
    %v758 = vld [vmem:[%s3] sm:$0xf]
    %v759 = vld [vmem:[%s3 + $0x4] sm:$0xf]
    %v760 = vld [vmem:[%s3 + $0x8] sm:$0xf]
    %v761 = vld [vmem:[%s3 + $0xc] sm:$0xf]
    %v762 = vld [vmem:[%s3 + $0x10] sm:$0xf]
    %v763 = vld [vmem:[%s3 + $0x14] sm:$0xf]
    %v764 = vld [vmem:[%s3 + $0x18] sm:$0xf]
    %v765 = vld [vmem:[%s3 + $0x1c] sm:$0xf]
    %v766 = vld [vmem:[%s3 + $0x20] sm:$0xf]
    %v767 = vld [vmem:[%s3 + $0x24] sm:$0xf]
    %v768 = vld [vmem:[%s3 + $0x28] sm:$0xf]
    %v769 = vld [vmem:[%s3 + $0x2c] sm:$0xf]
    %v770 = vld [vmem:[%s3 + $0x30] sm:$0xf]
    %v771 = vld [vmem:[%s3 + $0x34] sm:$0xf]
    %v772 = vld [vmem:[%s3 + $0x38] sm:$0xf]
    %v773 = vld [vmem:[%s3 + $0x3c] sm:$0xf]
    %v790 = vunpack.c.l.b16 %v758
    %v791 = vunpack.c.l.b16 %v759
    %v792 = vunpack.c.l.b16 %v760
    %v793 = vunpack.c.l.b16 %v761
    %v794 = vunpack.c.l.b16 %v762
    %v795 = vunpack.c.l.b16 %v763
    %v796 = vunpack.c.l.b16 %v764
    %v797 = vunpack.c.l.b16 %v765
    %v798 = vunpack.c.l.b16 %v766
    %v799 = vunpack.c.l.b16 %v767
    %v800 = vunpack.c.l.b16 %v768
    %v801 = vunpack.c.l.b16 %v769
    %v802 = vunpack.c.l.b16 %v770
    %v803 = vunpack.c.l.b16 %v771
    %v804 = vunpack.c.l.b16 %v772
    %v805 = vunpack.c.l.b16 %v773
    %v806 = vpack.c.b16 %v791, %v790
    %v807 = vpack.c.b16 %v793, %v792
    %v808 = vpack.c.b16 %v795, %v794
    %v809 = vpack.c.b16 %v797, %v796
    %v810 = vpack.c.b16 %v799, %v798
    %v811 = vpack.c.b16 %v801, %v800
    %v812 = vpack.c.b16 %v803, %v802
    %v813 = vpack.c.b16 %v805, %v804
    %822 = vmatprep.subr.bf16.mxu0 0
    %823 = vmatpush1.bf16.msra.mxu0 %v806
    %824 = vmatprep.subr.bf16.mxu0 0
    %825 = vmatpush1.bf16.msra.mxu0 %v807
    %826 = vmatprep.subr.bf16.mxu0 0
    %827 = vmatpush1.bf16.msra.mxu0 %v808
    %828 = vmatprep.subr.bf16.mxu0 0
    %829 = vmatpush1.bf16.msra.mxu0 %v809
    %830 = vmatprep.subr.bf16.mxu0 0
    %831 = vmatpush1.bf16.msra.mxu0 %v810
    %832 = vmatprep.subr.bf16.mxu0 0
    %833 = vmatpush1.bf16.msra.mxu0 %v811
    %834 = vmatprep.subr.bf16.mxu0 0
    %835 = vmatpush1.bf16.msra.mxu0 %v812
    %836 = vmatprep.subr.bf16.mxu0 0
    %837 = vmatpush1.bf16.msra.mxu0 %v813
    %838 = vmatprep.subr.bf16.mxu0 0
    %839 = vmatpush1.bf16.msra.mxu0 0
    %840 = vmatprep.subr.bf16.mxu0 0
    %841 = vmatpush1.bf16.msra.mxu0 0
    %842 = vmatprep.subr.bf16.mxu0 0
    %843 = vmatpush1.bf16.msra.mxu0 0
    %844 = vmatprep.subr.bf16.mxu0 0
    %845 = vmatpush1.bf16.msra.mxu0 0
    %846 = vmatprep.subr.bf16.mxu0 0
    %847 = vmatpush1.bf16.msra.mxu0 0
    %848 = vmatprep.subr.bf16.mxu0 0
    %849 = vmatpush1.bf16.msra.mxu0 0
    %850 = vmatprep.subr.bf16.mxu0 0
    %851 = vmatpush1.bf16.msra.mxu0 0
    %852 = vmatprep.subr.bf16.mxu0 0
    %853 = vmatpush1.bf16.msra.mxu0 0
    %854 = vmatprep.mubr.bf16.mxu0 0
    %855 = vmatmul.mubr.bf16.gmra.mrb[0].mxu0 %v742
    %v856 = vpop.f32.mrb[0].mxu0
    %v857 = vadd.f32 0.0, %v856
    %v858 = vpop.f32.mrb[0].mxu0
    %v859 = vpop.f32.mrb[0].mxu0
    %v860 = vadd.f32 0.0, %v859
    %v861 = vpop.f32.mrb[0].mxu0
    %862 = vmatprep.mubr.bf16.mxu0 0
    %863 = vmatmul.mubr.bf16.gmra.mrb[0].mxu0 %v743
    %v864 = vpop.f32.mrb[0].mxu0
    %v865 = vadd.f32 0.0, %v864
    %v866 = vpop.f32.mrb[0].mxu0
    %v867 = vpop.f32.mrb[0].mxu0
    %v868 = vadd.f32 0.0, %v867
    %v869 = vpop.f32.mrb[0].mxu0
    %870 = vmatprep.mubr.bf16.mxu0 0
    %871 = vmatmul.mubr.bf16.gmra.mrb[0].mxu0 %v744
    %v872 = vpop.f32.mrb[0].mxu0
    %v873 = vadd.f32 0.0, %v872
    %v874 = vpop.f32.mrb[0].mxu0
    %v875 = vpop.f32.mrb[0].mxu0
    %v876 = vadd.f32 0.0, %v875
    %v877 = vpop.f32.mrb[0].mxu0
    %878 = vmatprep.mubr.bf16.mxu0 0
    %879 = vmatmul.mubr.bf16.gmra.mrb[0].mxu0 %v745
    %v880 = vpop.f32.mrb[0].mxu0
    %v881 = vadd.f32 0.0, %v880
    %v882 = vpop.f32.mrb[0].mxu0
    %v883 = vpop.f32.mrb[0].mxu0
    %v884 = vadd.f32 0.0, %v883
    %v885 = vpop.f32.mrb[0].mxu0
    %886 = vmatprep.mubr.bf16.mxu0 0
    %887 = vmatmul.mubr.bf16.gmra.mrb[0].mxu0 %v746
    %v888 = vpop.f32.mrb[0].mxu0
    %v889 = vadd.f32 0.0, %v888
    %v890 = vpop.f32.mrb[0].mxu0
    %v891 = vpop.f32.mrb[0].mxu0
    %v892 = vadd.f32 0.0, %v891
    %v893 = vpop.f32.mrb[0].mxu0
    %894 = vmatprep.mubr.bf16.mxu0 0
    %895 = vmatmul.mubr.bf16.gmra.mrb[0].mxu0 %v747
    %v896 = vpop.f32.mrb[0].mxu0
    %v897 = vadd.f32 0.0, %v896
    %v898 = vpop.f32.mrb[0].mxu0
    %v899 = vpop.f32.mrb[0].mxu0
    %v900 = vadd.f32 0.0, %v899
    %v901 = vpop.f32.mrb[0].mxu0
    %902 = vmatprep.mubr.bf16.mxu0 0
    %903 = vmatmul.mubr.bf16.gmra.mrb[0].mxu0 %v748
    %v904 = vpop.f32.mrb[0].mxu0
    %v905 = vadd.f32 0.0, %v904
    %v906 = vpop.f32.mrb[0].mxu0
    %v907 = vpop.f32.mrb[0].mxu0
    %v908 = vadd.f32 0.0, %v907
    %v909 = vpop.f32.mrb[0].mxu0
    %910 = vmatprep.mubr.bf16.mxu0 0
    %911 = vmatmul.mubr.bf16.gmra.mrb[0].mxu0 %v749
    %v912 = vpop.f32.mrb[0].mxu0
    %v913 = vadd.f32 0.0, %v912
    %v914 = vpop.f32.mrb[0].mxu0
    %v915 = vpop.f32.mrb[0].mxu0
    %v916 = vadd.f32 0.0, %v915
    %v917 = vpop.f32.mrb[0].mxu0
    %918 = vmatprep.mubr.bf16.mxu0 0
    %919 = vmatmul.mubr.bf16.gmra.mrb[0].mxu0 %v750
    %v920 = vpop.f32.mrb[0].mxu0
    %v921 = vadd.f32 0.0, %v920
    %v922 = vpop.f32.mrb[0].mxu0
    %v923 = vpop.f32.mrb[0].mxu0
    %v924 = vadd.f32 0.0, %v923
    %v925 = vpop.f32.mrb[0].mxu0
    %926 = vmatprep.mubr.bf16.mxu0 0
    %927 = vmatmul.mubr.bf16.gmra.mrb[0].mxu0 %v751
    %v928 = vpop.f32.mrb[0].mxu0
    %v929 = vadd.f32 0.0, %v928
    %v930 = vpop.f32.mrb[0].mxu0
    %v931 = vpop.f32.mrb[0].mxu0
    %v932 = vadd.f32 0.0, %v931
    %v933 = vpop.f32.mrb[0].mxu0
    %934 = vmatprep.mubr.bf16.mxu0 0
    %935 = vmatmul.mubr.bf16.gmra.mrb[0].mxu0 %v752
    %v936 = vpop.f32.mrb[0].mxu0
    %v937 = vadd.f32 0.0, %v936
    %v938 = vpop.f32.mrb[0].mxu0
    %v939 = vpop.f32.mrb[0].mxu0
    %v940 = vadd.f32 0.0, %v939
    %v941 = vpop.f32.mrb[0].mxu0
    %942 = vmatprep.mubr.bf16.mxu0 0
    %943 = vmatmul.mubr.bf16.gmra.mrb[0].mxu0 %v753
    %v944 = vpop.f32.mrb[0].mxu0
    %v945 = vadd.f32 0.0, %v944
    %v946 = vpop.f32.mrb[0].mxu0
    %v947 = vpop.f32.mrb[0].mxu0
    %v948 = vadd.f32 0.0, %v947
    %v949 = vpop.f32.mrb[0].mxu0
    %950 = vmatprep.mubr.bf16.mxu0 0
    %951 = vmatmul.mubr.bf16.gmra.mrb[0].mxu0 %v754
    %v952 = vpop.f32.mrb[0].mxu0
    %v953 = vadd.f32 0.0, %v952
    %v954 = vpop.f32.mrb[0].mxu0
    %v955 = vpop.f32.mrb[0].mxu0
    %v956 = vadd.f32 0.0, %v955
    %v957 = vpop.f32.mrb[0].mxu0
    %958 = vmatprep.mubr.bf16.mxu0 0
    %959 = vmatmul.mubr.bf16.gmra.mrb[0].mxu0 %v755
    %v960 = vpop.f32.mrb[0].mxu0
    %v961 = vadd.f32 0.0, %v960
    %v962 = vpop.f32.mrb[0].mxu0
    %v963 = vpop.f32.mrb[0].mxu0
    %v964 = vadd.f32 0.0, %v963
    %v965 = vpop.f32.mrb[0].mxu0
    %966 = vmatprep.mubr.bf16.mxu0 0
    %967 = vmatmul.mubr.bf16.gmra.mrb[0].mxu0 %v756
    %v968 = vpop.f32.mrb[0].mxu0
    %v969 = vadd.f32 0.0, %v968
    %v970 = vpop.f32.mrb[0].mxu0
    %v971 = vpop.f32.mrb[0].mxu0
    %v972 = vadd.f32 0.0, %v971
    %v973 = vpop.f32.mrb[0].mxu0
    %974 = vmatprep.mubr.bf16.mxu0 0
    %975 = vmatmul.mubr.bf16.gmra.mrb[0].mxu0 %v757
    %v976 = vpop.f32.mrb[0].mxu0
    %v977 = vadd.f32 0.0, %v976
    %v978 = vpop.f32.mrb[0].mxu0
    %v979 = vpop.f32.mrb[0].mxu0
    %v980 = vadd.f32 0.0, %v979
    %v981 = vpop.f32.mrb[0].mxu0
    %982 = vdwg.mxu0
    %v983 = vpack.c.bf16 %v860, %v857
    %v984 = vpack.c.bf16 %v868, %v865
    %v985 = vpack.c.bf16 %v876, %v873
    %v986 = vpack.c.bf16 %v884, %v881
    %v987 = vpack.c.bf16 %v892, %v889
    %v988 = vpack.c.bf16 %v900, %v897
    %v989 = vpack.c.bf16 %v908, %v905
    %v990 = vpack.c.bf16 %v916, %v913
    %v991 = vpack.c.bf16 %v924, %v921
    %v992 = vpack.c.bf16 %v932, %v929
    %v993 = vpack.c.bf16 %v940, %v937
    %v994 = vpack.c.bf16 %v948, %v945
    %v995 = vpack.c.bf16 %v956, %v953
    %v996 = vpack.c.bf16 %v964, %v961
    %v997 = vpack.c.bf16 %v972, %v969
    %v998 = vpack.c.bf16 %v980, %v977
    %v1015 = vunpack.c.l.b16 %v983
    %v1016 = vunpack.c.h.b16 %v983
    %v1017 = vunpack.c.l.b16 %v984
    %v1018 = vunpack.c.h.b16 %v984
    %v1019 = vunpack.c.l.b16 %v985
    %v1020 = vunpack.c.h.b16 %v985
    %v1021 = vunpack.c.l.b16 %v986
    %v1022 = vunpack.c.h.b16 %v986
    %v1023 = vunpack.c.l.b16 %v987
    %v1024 = vunpack.c.h.b16 %v987
    %v1025 = vunpack.c.l.b16 %v988
    %v1026 = vunpack.c.h.b16 %v988
    %v1027 = vunpack.c.l.b16 %v989
    %v1028 = vunpack.c.h.b16 %v989
    %v1029 = vunpack.c.l.b16 %v990
    %v1030 = vunpack.c.h.b16 %v990
    %v1031 = vunpack.c.l.b16 %v991
    %v1032 = vunpack.c.h.b16 %v991
    %v1033 = vunpack.c.l.b16 %v992
    %v1034 = vunpack.c.h.b16 %v992
    %v1035 = vunpack.c.l.b16 %v993
    %v1036 = vunpack.c.h.b16 %v993
    %v1037 = vunpack.c.l.b16 %v994
    %v1038 = vunpack.c.h.b16 %v994
    %v1039 = vunpack.c.l.b16 %v995
    %v1040 = vunpack.c.h.b16 %v995
    %v1041 = vunpack.c.l.b16 %v996
    %v1042 = vunpack.c.h.b16 %v996
    %v1043 = vunpack.c.l.b16 %v997
    %v1044 = vunpack.c.h.b16 %v997
    %v1045 = vunpack.c.l.b16 %v998
    %v1046 = vunpack.c.h.b16 %v998
    %v1047 = vpack.c.b16 %v1015, %v1015
    %v1048 = vpack.c.b16 %v1016, %v1016
    %v1049 = vpack.c.b16 %v1017, %v1017
    %v1050 = vpack.c.b16 %v1018, %v1018
    %v1051 = vpack.c.b16 %v1019, %v1019
    %v1052 = vpack.c.b16 %v1020, %v1020
    %v1053 = vpack.c.b16 %v1021, %v1021
    %v1054 = vpack.c.b16 %v1022, %v1022
    %v1055 = vpack.c.b16 %v1023, %v1023
    %v1056 = vpack.c.b16 %v1024, %v1024
    %v1057 = vpack.c.b16 %v1025, %v1025
    %v1058 = vpack.c.b16 %v1026, %v1026
    %v1059 = vpack.c.b16 %v1027, %v1027
    %v1060 = vpack.c.b16 %v1028, %v1028
    %v1061 = vpack.c.b16 %v1029, %v1029
    %v1062 = vpack.c.b16 %v1030, %v1030
    %v1063 = vpack.c.b16 %v1031, %v1031
    %v1064 = vpack.c.b16 %v1032, %v1032
    %v1065 = vpack.c.b16 %v1033, %v1033
    %v1066 = vpack.c.b16 %v1034, %v1034
    %v1067 = vpack.c.b16 %v1035, %v1035
    %v1068 = vpack.c.b16 %v1036, %v1036
    %v1069 = vpack.c.b16 %v1037, %v1037
    %v1070 = vpack.c.b16 %v1038, %v1038
    %v1071 = vpack.c.b16 %v1039, %v1039
    %v1072 = vpack.c.b16 %v1040, %v1040
    %v1073 = vpack.c.b16 %v1041, %v1041
    %v1074 = vpack.c.b16 %v1042, %v1042
    %v1075 = vpack.c.b16 %v1043, %v1043
    %v1076 = vpack.c.b16 %v1044, %v1044
    %v1077 = vpack.c.b16 %v1045, %v1045
    %v1078 = vpack.c.b16 %v1046, %v1046
    %1111 = vst [vmem:[%s4] sm:$0xf] %v1047
    %1112 = vst [vmem:[%s4 + $0x4] sm:$0xf] %v1048
    %1113 = vst [vmem:[%s4 + $0x8] sm:$0xf] %v1049
    %1114 = vst [vmem:[%s4 + $0xc] sm:$0xf] %v1050
    %1115 = vst [vmem:[%s4 + $0x10] sm:$0xf] %v1051
    %1116 = vst [vmem:[%s4 + $0x14] sm:$0xf] %v1052
    %1117 = vst [vmem:[%s4 + $0x18] sm:$0xf] %v1053
    %1118 = vst [vmem:[%s4 + $0x1c] sm:$0xf] %v1054
    %1119 = vst [vmem:[%s4 + $0x20] sm:$0xf] %v1055
    %1120 = vst [vmem:[%s4 + $0x24] sm:$0xf] %v1056
    %1121 = vst [vmem:[%s4 + $0x28] sm:$0xf] %v1057
    %1122 = vst [vmem:[%s4 + $0x2c] sm:$0xf] %v1058
    %1123 = vst [vmem:[%s4 + $0x30] sm:$0xf] %v1059
    %1124 = vst [vmem:[%s4 + $0x34] sm:$0xf] %v1060
    %1125 = vst [vmem:[%s4 + $0x38] sm:$0xf] %v1061
    %1126 = vst [vmem:[%s4 + $0x3c] sm:$0xf] %v1062
    %1127 = vst [vmem:[%s4 + $0x40] sm:$0xf] %v1063
    %1128 = vst [vmem:[%s4 + $0x44] sm:$0xf] %v1064
    %1129 = vst [vmem:[%s4 + $0x48] sm:$0xf] %v1065
    %1130 = vst [vmem:[%s4 + $0x4c] sm:$0xf] %v1066
    %1131 = vst [vmem:[%s4 + $0x50] sm:$0xf] %v1067
    %1132 = vst [vmem:[%s4 + $0x54] sm:$0xf] %v1068
    %1133 = vst [vmem:[%s4 + $0x58] sm:$0xf] %v1069
    %1134 = vst [vmem:[%s4 + $0x5c] sm:$0xf] %v1070
    %1135 = vst [vmem:[%s4 + $0x60] sm:$0xf] %v1071
    %1136 = vst [vmem:[%s4 + $0x64] sm:$0xf] %v1072
    %1137 = vst [vmem:[%s4 + $0x68] sm:$0xf] %v1073
    %1138 = vst [vmem:[%s4 + $0x6c] sm:$0xf] %v1074
    %1139 = vst [vmem:[%s4 + $0x70] sm:$0xf] %v1075
    %1140 = vst [vmem:[%s4 + $0x74] sm:$0xf] %v1076
    %1141 = vst [vmem:[%s4 + $0x78] sm:$0xf] %v1077
    %1142 = vst [vmem:[%s4 + $0x7c] sm:$0xf] %v1078
  $region25: #{gcn_forward.2} parent=0 // pred_fallthru
    _
  // Predicated region
  $region26: #{gcn_forward.2} parent=0 // pred_check
    _
  $region27: #{gcn_forward.2} parent=0 // pred_check_branch
    %1144 = sbr.rel (0) target = $region29
  $region28: #{gcn_forward.2} parent=0 // pred_region
    _
  $region29: #{gcn_forward.2} parent=0 // pred_fallthru
    _
  // Predicated region
  $region30: #{gcn_forward.2} parent=0 // pred_check
    _
  $region31: #{gcn_forward.2} parent=0 // pred_check_branch
    %1146 = sbr.rel (0) target = $region33
  $region32: #{gcn_forward.2} parent=0 // pred_region
    _
  $region33: #{gcn_forward.2} parent=0 // pred_fallthru
    _

</llo_original>
